<compile_context>
chip_gen: v5e
topology: v5e:2x2
jax: 0.10.0
libtpu: 0.0.40
codegen_flags: <defaults>
</compile_context>

<pallas_src>
import functools

import jax
import jax.numpy as jnp
from jax import lax
from jax.experimental import pallas as pl
from jax.experimental.pallas import tpu as pltpu

# ----------------------------- hyper-parameters -----------------------------
LAMBD = 25.0   # λ  (invariance / sim weight)
MU    = 25.0   # μ  (variance weight)
NU    = 1.0    # ν  (covariance weight)
GAMMA = 1.0    # γ  (std target)
EPS   = 1e-4   # ε


def _vicreg_kernel(x1_ref, x2_ref, wb_ref, w1_ref, w2_ref, w3_ref, loss_ref,
                   s_ref, ss_ref, g1_ref, g2_ref, sse_ref,
                   *, n_total, lambd, mu, nu, gamma, eps):
    """One batch tile: fused GAP + stacked projector pass + running VICReg stats."""
    tn = x1_ref.shape[0]          # batch tile (static)
    d = g1_ref.shape[0]           # projector output dim (static)
    step = pl.program_id(0)
    last = pl.num_programs(0) - 1

    @pl.when(step == 0)
    def _init():
        s_ref[...] = jnp.zeros_like(s_ref)
        ss_ref[...] = jnp.zeros_like(ss_ref)
        g1_ref[...] = jnp.zeros_like(g1_ref)
        g2_ref[...] = jnp.zeros_like(g2_ref)
        sse_ref[...] = jnp.zeros_like(sse_ref)

    # ---- synthetic backbone: global average pool over fused spatial axis ----
    f1 = jnp.mean(x1_ref[...], axis=-1)                # [tn, C] f32
    f2 = jnp.mean(x2_ref[...], axis=-1)

    # ---- projector: both views stacked -> one MXU pass per layer ----
    x = jnp.concatenate([f1, f2], axis=0)              # [2*tn, C] f32

    def mm(a, w_ref):
        # bf16 MXU operands, f32 accumulation.
        return jnp.dot(a.astype(jnp.bfloat16), w_ref[...],
                       preferred_element_type=jnp.float32)

    h = jnp.maximum(mm(x, wb_ref), 0.0)   # synthetic backbone feature linear
    h = jnp.maximum(mm(h, w1_ref), 0.0)   # projector Linear(bias=False)+ReLU
    h = jnp.maximum(mm(h, w2_ref), 0.0)
    z = mm(h, w3_ref)                     # [2*tn, D] f32
    z1 = z[:tn]
    z2 = z[tn:]

    # ---- running f32 statistics (single full-tile store per accumulator) ----
    s_ref[...] += jnp.concatenate(
        [jnp.sum(z1, axis=0, keepdims=True),
         jnp.sum(z2, axis=0, keepdims=True)], axis=0)           # Σ z      [2, D]
    ss_ref[...] += jnp.concatenate(
        [jnp.sum(z1 * z1, axis=0, keepdims=True),
         jnp.sum(z2 * z2, axis=0, keepdims=True)], axis=0)      # Σ z⊙z    [2, D]

    dn = (((0,), (0,)), ((), ()))   # contract over batch axis -> [D, D] gram
    g1_ref[...] += lax.dot_general(z1, z1, dn,
                                   preferred_element_type=jnp.float32)
    g2_ref[...] += lax.dot_general(z2, z2, dn,
                                   preferred_element_type=jnp.float32)

    diff = z1 - z2
    sse_ref[...] += jnp.sum(diff * diff, axis=0, keepdims=True)  # [1, D]

    # ---- finalize loss on the last batch tile ----
    @pl.when(step == last)
    def _finalize():
        n = float(n_total)
        mean = s_ref[...] / n                                    # [2, D]
        var = (ss_ref[...] - n * mean * mean) / (n - 1.0)        # unbiased var
        std = jnp.sqrt(var + eps)
        # relu(γ-std1).mean() + relu(γ-std2).mean()
        std_loss = jnp.sum(jnp.maximum(gamma - std, 0.0), keepdims=True) / d

        m1 = mean[0:1, :]
        m2 = mean[1:2, :]
        cov1 = (g1_ref[...] - n * lax.dot_general(
            m1, m1, dn, preferred_element_type=jnp.float32)) / (n - 1.0)
        cov2 = (g2_ref[...] - n * lax.dot_general(
            m2, m2, dn, preferred_element_type=jnp.float32)) / (n - 1.0)
        # off-diagonal^2 sum = Frobenius^2 - diag^2, diag(cov) == var
        cov_loss = (jnp.sum(cov1 * cov1, keepdims=True)
                    + jnp.sum(cov2 * cov2, keepdims=True)
                    - jnp.sum(var * var, keepdims=True)) / d

        sim_loss = jnp.sum(sse_ref[...], keepdims=True) / (n * d)  # (1, 1)
        loss_ref[...] = lambd * sim_loss + mu * std_loss + nu * cov_loss


def vicreg_forward(x1, x2, wb, w1, w2, w3, *, batch_tile=8,
                   lambd=LAMBD, mu=MU, nu=NU, gamma=GAMMA, eps=EPS):
    """x1, x2: NCHW images.  Weights bf16 (bias-free).  Returns scalar loss."""
    assert x1.shape == x2.shape
    n, c, h, w = x1.shape
    assert n % batch_tile == 0, "demo requires batch % batch_tile == 0"
    nsteps = n // batch_tile
    d = w3.shape[1]
    hw = h * w
    assert hw % 128 == 0, "demo keeps the fused spatial axis lane-dense"

    # Lane-dense image view; GAP happens inside the kernel.
    x1f = x1.reshape(n, c, hw).astype(jnp.float32)
    x2f = x2.reshape(n, c, hw).astype(jnp.float32)

    kernel = functools.partial(_vicreg_kernel, n_total=n, lambd=lambd, mu=mu,
                               nu=nu, gamma=gamma, eps=eps)

    grid_spec = pltpu.PrefetchScalarGridSpec(
        num_scalar_prefetch=0,
        grid=(nsteps,),
        in_specs=[
            pl.BlockSpec((batch_tile, c, hw), lambda i: (i, 0, 0)),  # x1 tile
            pl.BlockSpec((batch_tile, c, hw), lambda i: (i, 0, 0)),  # x2 tile
            pl.BlockSpec(wb.shape, lambda i: (0, 0)),                # resident weights
            pl.BlockSpec(w1.shape, lambda i: (0, 0)),
            pl.BlockSpec(w2.shape, lambda i: (0, 0)),
            pl.BlockSpec(w3.shape, lambda i: (0, 0)),
        ],
        out_specs=pl.BlockSpec((1, 1), lambda i: (0, 0)),
        scratch_shapes=[
            pltpu.VMEM((2, d), jnp.float32),    # Σ z   (row 0: view1, row 1: view2)
            pltpu.VMEM((2, d), jnp.float32),    # Σ z*z
            pltpu.VMEM((d, d), jnp.float32),    # gram view1
            pltpu.VMEM((d, d), jnp.float32),    # gram view2
            pltpu.VMEM((1, d), jnp.float32),    # Σ (z1-z2)^2 per feature
        ])

    loss = pl.pallas_call(
        kernel,
        out_shape=jax.ShapeDtypeStruct((1, 1), jnp.float32),
        grid_spec=grid_spec,
        compiler_params=pltpu.CompilerParams(
            dimension_semantics=("arbitrary",)),   # batch axis is a reduction
    )(x1f, x2f, wb, w1, w2, w3)
    return loss[0, 0]


if __name__ == "__main__":
    # Small, deterministic, lane-dense setup.
    N, C, H, W = 16, 4, 16, 16       # batch, channels, spatial
    REPRE_DIM = 128                  # backbone.fc.in_features (lane-dense)
    HIDDEN = (128, 128, 128)         # projector_hidden (scaled-down, lane-dense)

    key = jax.random.PRNGKey(0)
    k_x1, k_x2, k_wb, k_w1, k_w2, k_w3 = jax.random.split(key, 6)

    x1 = jax.random.normal(k_x1, (N, C, H, W), dtype=jnp.float32)
    x2 = jax.random.normal(k_x2, (N, C, H, W), dtype=jnp.float32)

    # Deterministic bf16 parameters (bias=False everywhere, as in the module).
    wb = (0.1 * jax.random.normal(k_wb, (C, REPRE_DIM))).astype(jnp.bfloat16)
    w1 = (0.1 * jax.random.normal(k_w1, (REPRE_DIM, HIDDEN[0]))).astype(jnp.bfloat16)
    w2 = (0.1 * jax.random.normal(k_w2, (HIDDEN[0], HIDDEN[1]))).astype(jnp.bfloat16)
    w3 = (0.1 * jax.random.normal(k_w3, (HIDDEN[1], HIDDEN[2]))).astype(jnp.bfloat16)

    loss = vicreg_forward(x1, x2, wb, w1, w2, w3, batch_tile=8)
    jax.block_until_ready(loss)

    # Reference: identical bf16-input / f32-accumulate projector, but the loss
    # is the literal PyTorch formulation (two-pass var, explicit off-diag mask)
    # in f32 — this cross-checks the kernel's single-pass / mask-free math.
    def _ref(x1, x2):
        def proj(x):
            h = jnp.mean(x, axis=(2, 3)).astype(jnp.float32)
            for w, act in ((wb, True), (w1, True), (w2, True), (w3, False)):
                h = jnp.dot(h.astype(jnp.bfloat16), w,
                            preferred_element_type=jnp.float32)
                if act:
                    h = jnp.maximum(h, 0.0)
            return h
        z1, z2 = proj(x1), proj(x2)
        n, d = z1.shape
        sim = jnp.mean((z1 - z2) ** 2)
        s1 = jnp.sqrt(jnp.var(z1, axis=0, ddof=1) + EPS)
        s2 = jnp.sqrt(jnp.var(z2, axis=0, ddof=1) + EPS)
        std = (jnp.mean(jnp.maximum(GAMMA - s1, 0.0)) +
               jnp.mean(jnp.maximum(GAMMA - s2, 0.0)))
        zc1, zc2 = z1 - z1.mean(0), z2 - z2.mean(0)
        c1, c2 = zc1.T @ zc1 / (n - 1), zc2.T @ zc2 / (n - 1)
        offm = 1.0 - jnp.eye(d)
        cov = (jnp.sum((c1 * offm) ** 2) + jnp.sum((c2 * offm) ** 2)) / d
        return LAMBD * sim + MU * std + NU * cov

    ref = _ref(x1, x2)
    assert jnp.allclose(loss, ref, rtol=1e-3, atol=1e-3), (loss, ref)

    print("KERNEL_OK")
</pallas_src>

<mosaic_0001>
module attributes {stable_mosaic.version = 11 : i64} {
  func.func @_vicreg_kernel(%arg0: i32, %arg1: memref<8x4x256xf32, #tpu.memory_space<vmem>>, %arg2: memref<8x4x256xf32, #tpu.memory_space<vmem>>, %arg3: memref<4x128xbf16, #tpu.memory_space<vmem>>, %arg4: memref<128x128xbf16, #tpu.memory_space<vmem>>, %arg5: memref<128x128xbf16, #tpu.memory_space<vmem>>, %arg6: memref<128x128xbf16, #tpu.memory_space<vmem>>, %arg7: memref<1x1xf32, #tpu.memory_space<vmem>>, %arg8: memref<2x128xf32, #tpu.memory_space<vmem>>, %arg9: memref<2x128xf32, #tpu.memory_space<vmem>>, %arg10: memref<128x128xf32, #tpu.memory_space<vmem>>, %arg11: memref<128x128xf32, #tpu.memory_space<vmem>>, %arg12: memref<1x128xf32, #tpu.memory_space<vmem>>) attributes {dimension_semantics = [#tpu.dimension_semantics<arbitrary>], iteration_bounds = array<i64: 2>, scalar_prefetch = 0 : i64, scratch_operands = 5 : i64, tpu.core_type = #tpu.core_type<tc>, window_params = [{transform_indices = @transform_0, window_bounds = array<i64: 8, 4, 256>}, {transform_indices = @transform_1, window_bounds = array<i64: 8, 4, 256>}, {pipeline_mode = #tpu.pipeline_mode<synchronous>, transform_indices = @transform_2, window_bounds = array<i64: 4, 128>}, {pipeline_mode = #tpu.pipeline_mode<synchronous>, transform_indices = @transform_3, window_bounds = array<i64: 128, 128>}, {pipeline_mode = #tpu.pipeline_mode<synchronous>, transform_indices = @transform_4, window_bounds = array<i64: 128, 128>}, {pipeline_mode = #tpu.pipeline_mode<synchronous>, transform_indices = @transform_5, window_bounds = array<i64: 128, 128>}, {pipeline_mode = #tpu.pipeline_mode<synchronous>, transform_indices = @transform_6, window_bounds = array<i64: 1, 1>}]} {
    %c0_i32 = arith.constant 0 : i32
    %0 = arith.cmpi eq, %arg0, %c0_i32 : i32
    %1 = arith.extui %0 : i1 to i32
    %c0_i32_0 = arith.constant 0 : i32
    %2 = arith.cmpi ne, %1, %c0_i32_0 : i32
    scf.if %2 {
      %cst_52 = arith.constant 0.000000e+00 : f32
      %68 = vector.broadcast %cst_52 : f32 to vector<2x128xf32>
      %c0_53 = arith.constant 0 : index
      %c0_54 = arith.constant 0 : index
      %69 = vector.load %arg8[%c0_53, %c0_54] : memref<2x128xf32, #tpu.memory_space<vmem>>, vector<2x128xf32>
      tpu.vector_store %arg8[%c0_53, %c0_54], %68 {strides = array<i32>} : memref<2x128xf32, #tpu.memory_space<vmem>>, vector<2x128xf32>,
      %cst_55 = arith.constant 0.000000e+00 : f32
      %70 = vector.broadcast %cst_55 : f32 to vector<2x128xf32>
      %c0_56 = arith.constant 0 : index
      %c0_57 = arith.constant 0 : index
      %71 = vector.load %arg9[%c0_56, %c0_57] : memref<2x128xf32, #tpu.memory_space<vmem>>, vector<2x128xf32>
      tpu.vector_store %arg9[%c0_56, %c0_57], %70 {strides = array<i32>} : memref<2x128xf32, #tpu.memory_space<vmem>>, vector<2x128xf32>,
      %cst_58 = arith.constant 0.000000e+00 : f32
      %72 = vector.broadcast %cst_58 : f32 to vector<128x128xf32>
      %c0_59 = arith.constant 0 : index
      %c0_60 = arith.constant 0 : index
      %73 = vector.load %arg10[%c0_59, %c0_60] : memref<128x128xf32, #tpu.memory_space<vmem>>, vector<128x128xf32>
      tpu.vector_store %arg10[%c0_59, %c0_60], %72 {strides = array<i32>} : memref<128x128xf32, #tpu.memory_space<vmem>>, vector<128x128xf32>,
      %cst_61 = arith.constant 0.000000e+00 : f32
      %74 = vector.broadcast %cst_61 : f32 to vector<128x128xf32>
      %c0_62 = arith.constant 0 : index
      %c0_63 = arith.constant 0 : index
      %75 = vector.load %arg11[%c0_62, %c0_63] : memref<128x128xf32, #tpu.memory_space<vmem>>, vector<128x128xf32>
      tpu.vector_store %arg11[%c0_62, %c0_63], %74 {strides = array<i32>} : memref<128x128xf32, #tpu.memory_space<vmem>>, vector<128x128xf32>,
      %cst_64 = arith.constant 0.000000e+00 : f32
      %76 = vector.broadcast %cst_64 : f32 to vector<1x128xf32>
      %c0_65 = arith.constant 0 : index
      %c0_66 = arith.constant 0 : index
      %77 = vector.load %arg12[%c0_65, %c0_66] : memref<1x128xf32, #tpu.memory_space<vmem>>, vector<1x128xf32>
      tpu.vector_store %arg12[%c0_65, %c0_66], %76 {strides = array<i32>} : memref<1x128xf32, #tpu.memory_space<vmem>>, vector<1x128xf32>,
    } else {
    }
    %c0 = arith.constant 0 : index
    %c0_1 = arith.constant 0 : index
    %c0_2 = arith.constant 0 : index
    %3 = vector.load %arg1[%c0, %c0_1, %c0_2] : memref<8x4x256xf32, #tpu.memory_space<vmem>>, vector<8x4x256xf32>
    %cst = arith.constant dense<0.000000e+00> : vector<8x4xf32>
    %4 = vector.multi_reduction <add>, %3, %cst [2] : vector<8x4x256xf32> to vector<8x4xf32>
    %cst_3 = arith.constant 2.560000e+02 : f32
    %5 = vector.broadcast %cst_3 : f32 to vector<8x4xf32>
    %6 = arith.divf %4, %5 : vector<8x4xf32>
    %c0_4 = arith.constant 0 : index
    %c0_5 = arith.constant 0 : index
    %c0_6 = arith.constant 0 : index
    %7 = vector.load %arg2[%c0_4, %c0_5, %c0_6] : memref<8x4x256xf32, #tpu.memory_space<vmem>>, vector<8x4x256xf32>
    %cst_7 = arith.constant dense<0.000000e+00> : vector<8x4xf32>
    %8 = vector.multi_reduction <add>, %7, %cst_7 [2] : vector<8x4x256xf32> to vector<8x4xf32>
    %cst_8 = arith.constant 2.560000e+02 : f32
    %9 = vector.broadcast %cst_8 : f32 to vector<8x4xf32>
    %10 = arith.divf %8, %9 : vector<8x4xf32>
    %11 = tpu.concatenate %6, %10 in 0 : vector<8x4xf32>, vector<8x4xf32> -> vector<16x4xf32>
    %12 = arith.truncf %11 : vector<16x4xf32> to vector<16x4xbf16>
    %c0_9 = arith.constant 0 : index
    %c0_10 = arith.constant 0 : index
    %13 = vector.load %arg3[%c0_9, %c0_10] : memref<4x128xbf16, #tpu.memory_space<vmem>>, vector<4x128xbf16>
    %cst_11 = arith.constant dense<0.000000e+00> : vector<16x128xf32>
    %14 = tpu.matmul %12, %13, %cst_11 {dimension_numbers = #tpu.dot_dimension_numbers<[1], [0], [0], [1], [0, 0, 1, 1], [], []>} : vector<16x4xbf16>, vector<4x128xbf16>, vector<16x128xf32> -> vector<16x128xf32>
    %cst_12 = arith.constant 0.000000e+00 : f32
    %15 = vector.broadcast %cst_12 : f32 to vector<16x128xf32>
    %16 = arith.maximumf %14, %15 : vector<16x128xf32>
    %17 = arith.truncf %16 : vector<16x128xf32> to vector<16x128xbf16>
    %c0_13 = arith.constant 0 : index
    %c0_14 = arith.constant 0 : index
    %18 = vector.load %arg4[%c0_13, %c0_14] : memref<128x128xbf16, #tpu.memory_space<vmem>>, vector<128x128xbf16>
    %cst_15 = arith.constant dense<0.000000e+00> : vector<16x128xf32>
    %19 = tpu.matmul %17, %18, %cst_15 {dimension_numbers = #tpu.dot_dimension_numbers<[1], [0], [0], [1], [0, 0, 1, 1], [], []>} : vector<16x128xbf16>, vector<128x128xbf16>, vector<16x128xf32> -> vector<16x128xf32>
    %cst_16 = arith.constant 0.000000e+00 : f32
    %20 = vector.broadcast %cst_16 : f32 to vector<16x128xf32>
    %21 = arith.maximumf %19, %20 : vector<16x128xf32>
    %22 = arith.truncf %21 : vector<16x128xf32> to vector<16x128xbf16>
    %c0_17 = arith.constant 0 : index
    %c0_18 = arith.constant 0 : index
    %23 = vector.load %arg5[%c0_17, %c0_18] : memref<128x128xbf16, #tpu.memory_space<vmem>>, vector<128x128xbf16>
    %cst_19 = arith.constant dense<0.000000e+00> : vector<16x128xf32>
    %24 = tpu.matmul %22, %23, %cst_19 {dimension_numbers = #tpu.dot_dimension_numbers<[1], [0], [0], [1], [0, 0, 1, 1], [], []>} : vector<16x128xbf16>, vector<128x128xbf16>, vector<16x128xf32> -> vector<16x128xf32>
    %cst_20 = arith.constant 0.000000e+00 : f32
    %25 = vector.broadcast %cst_20 : f32 to vector<16x128xf32>
    %26 = arith.maximumf %24, %25 : vector<16x128xf32>
    %27 = arith.truncf %26 : vector<16x128xf32> to vector<16x128xbf16>
    %c0_21 = arith.constant 0 : index
    %c0_22 = arith.constant 0 : index
    %28 = vector.load %arg6[%c0_21, %c0_22] : memref<128x128xbf16, #tpu.memory_space<vmem>>, vector<128x128xbf16>
    %cst_23 = arith.constant dense<0.000000e+00> : vector<16x128xf32>
    %29 = tpu.matmul %27, %28, %cst_23 {dimension_numbers = #tpu.dot_dimension_numbers<[1], [0], [0], [1], [0, 0, 1, 1], [], []>} : vector<16x128xbf16>, vector<128x128xbf16>, vector<16x128xf32> -> vector<16x128xf32>
    %30 = vector.extract_strided_slice %29 {offsets = [0, 0], sizes = [8, 128], strides = [1, 1]} : vector<16x128xf32> to vector<8x128xf32>
    %31 = vector.extract_strided_slice %29 {offsets = [8, 0], sizes = [8, 128], strides = [1, 1]} : vector<16x128xf32> to vector<8x128xf32>
    %c0_24 = arith.constant 0 : index
    %c0_25 = arith.constant 0 : index
    %32 = vector.load %arg8[%c0_24, %c0_25] : memref<2x128xf32, #tpu.memory_space<vmem>>, vector<2x128xf32>
    %cst_26 = arith.constant dense<0.000000e+00> : vector<128xf32>
    %33 = vector.multi_reduction <add>, %30, %cst_26 [0] : vector<8x128xf32> to vector<128xf32>
    %34 = vector.shape_cast %33 : vector<128xf32> to vector<1x128xf32>
    %cst_27 = arith.constant dense<0.000000e+00> : vector<128xf32>
    %35 = vector.multi_reduction <add>, %31, %cst_27 [0] : vector<8x128xf32> to vector<128xf32>
    %36 = vector.shape_cast %35 : vector<128xf32> to vector<1x128xf32>
    %37 = tpu.concatenate %34, %36 in 0 : vector<1x128xf32>, vector<1x128xf32> -> vector<2x128xf32>
    %38 = arith.addf %32, %37 : vector<2x128xf32>
    %c0_28 = arith.constant 0 : index
    %c0_29 = arith.constant 0 : index
    %39 = vector.load %arg8[%c0_28, %c0_29] : memref<2x128xf32, #tpu.memory_space<vmem>>, vector<2x128xf32>
    tpu.vector_store %arg8[%c0_28, %c0_29], %38 {strides = array<i32>} : memref<2x128xf32, #tpu.memory_space<vmem>>, vector<2x128xf32>,
    %c0_30 = arith.constant 0 : index
    %c0_31 = arith.constant 0 : index
    %40 = vector.load %arg9[%c0_30, %c0_31] : memref<2x128xf32, #tpu.memory_space<vmem>>, vector<2x128xf32>
    %41 = arith.mulf %30, %30 : vector<8x128xf32>
    %cst_32 = arith.constant dense<0.000000e+00> : vector<128xf32>
    %42 = vector.multi_reduction <add>, %41, %cst_32 [0] : vector<8x128xf32> to vector<128xf32>
    %43 = vector.shape_cast %42 : vector<128xf32> to vector<1x128xf32>
    %44 = arith.mulf %31, %31 : vector<8x128xf32>
    %cst_33 = arith.constant dense<0.000000e+00> : vector<128xf32>
    %45 = vector.multi_reduction <add>, %44, %cst_33 [0] : vector<8x128xf32> to vector<128xf32>
    %46 = vector.shape_cast %45 : vector<128xf32> to vector<1x128xf32>
    %47 = tpu.concatenate %43, %46 in 0 : vector<1x128xf32>, vector<1x128xf32> -> vector<2x128xf32>
    %48 = arith.addf %40, %47 : vector<2x128xf32>
    %c0_34 = arith.constant 0 : index
    %c0_35 = arith.constant 0 : index
    %49 = vector.load %arg9[%c0_34, %c0_35] : memref<2x128xf32, #tpu.memory_space<vmem>>, vector<2x128xf32>
    tpu.vector_store %arg9[%c0_34, %c0_35], %48 {strides = array<i32>} : memref<2x128xf32, #tpu.memory_space<vmem>>, vector<2x128xf32>,
    %c0_36 = arith.constant 0 : index
    %c0_37 = arith.constant 0 : index
    %50 = vector.load %arg10[%c0_36, %c0_37] : memref<128x128xf32, #tpu.memory_space<vmem>>, vector<128x128xf32>
    %cst_38 = arith.constant dense<0.000000e+00> : vector<128x128xf32>
    %51 = tpu.matmul %30, %30, %cst_38 {dimension_numbers = #tpu.dot_dimension_numbers<[0], [0], [1], [1], [0, 1, 1, 1], [], []>} : vector<8x128xf32>, vector<8x128xf32>, vector<128x128xf32> -> vector<128x128xf32>
    %52 = arith.addf %50, %51 : vector<128x128xf32>
    %c0_39 = arith.constant 0 : index
    %c0_40 = arith.constant 0 : index
    %53 = vector.load %arg10[%c0_39, %c0_40] : memref<128x128xf32, #tpu.memory_space<vmem>>, vector<128x128xf32>
    tpu.vector_store %arg10[%c0_39, %c0_40], %52 {strides = array<i32>} : memref<128x128xf32, #tpu.memory_space<vmem>>, vector<128x128xf32>,
    %c0_41 = arith.constant 0 : index
    %c0_42 = arith.constant 0 : index
    %54 = vector.load %arg11[%c0_41, %c0_42] : memref<128x128xf32, #tpu.memory_space<vmem>>, vector<128x128xf32>
    %cst_43 = arith.constant dense<0.000000e+00> : vector<128x128xf32>
    %55 = tpu.matmul %31, %31, %cst_43 {dimension_numbers = #tpu.dot_dimension_numbers<[0], [0], [1], [1], [0, 1, 1, 1], [], []>} : vector<8x128xf32>, vector<8x128xf32>, vector<128x128xf32> -> vector<128x128xf32>
    %56 = arith.addf %54, %55 : vector<128x128xf32>
    %c0_44 = arith.constant 0 : index
    %c0_45 = arith.constant 0 : index
    %57 = vector.load %arg11[%c0_44, %c0_45] : memref<128x128xf32, #tpu.memory_space<vmem>>, vector<128x128xf32>
    tpu.vector_store %arg11[%c0_44, %c0_45], %56 {strides = array<i32>} : memref<128x128xf32, #tpu.memory_space<vmem>>, vector<128x128xf32>,
    %58 = arith.subf %30, %31 : vector<8x128xf32>
    %c0_46 = arith.constant 0 : index
    %c0_47 = arith.constant 0 : index
    %59 = vector.load %arg12[%c0_46, %c0_47] : memref<1x128xf32, #tpu.memory_space<vmem>>, vector<1x128xf32>
    %60 = arith.mulf %58, %58 : vector<8x128xf32>
    %cst_48 = arith.constant dense<0.000000e+00> : vector<128xf32>
    %61 = vector.multi_reduction <add>, %60, %cst_48 [0] : vector<8x128xf32> to vector<128xf32>
    %62 = vector.shape_cast %61 : vector<128xf32> to vector<1x128xf32>
    %63 = arith.addf %59, %62 : vector<1x128xf32>
    %c0_49 = arith.constant 0 : index
    %c0_50 = arith.constant 0 : index
    %64 = vector.load %arg12[%c0_49, %c0_50] : memref<1x128xf32, #tpu.memory_space<vmem>>, vector<1x128xf32>
    tpu.vector_store %arg12[%c0_49, %c0_50], %63 {strides = array<i32>} : memref<1x128xf32, #tpu.memory_space<vmem>>, vector<1x128xf32>,
    %c1_i32 = arith.constant 1 : i32
    %65 = arith.cmpi eq, %arg0, %c1_i32 : i32
    %66 = arith.extui %65 : i1 to i32
    %c0_i32_51 = arith.constant 0 : i32
    %67 = arith.cmpi ne, %66, %c0_i32_51 : i32
    scf.if %67 {
      %c0_52 = arith.constant 0 : index
      %c0_53 = arith.constant 0 : index
      %68 = vector.load %arg8[%c0_52, %c0_53] : memref<2x128xf32, #tpu.memory_space<vmem>>, vector<2x128xf32>
      %cst_54 = arith.constant 1.600000e+01 : f32
      %69 = vector.broadcast %cst_54 : f32 to vector<2x128xf32>
      %70 = arith.divf %68, %69 : vector<2x128xf32>
      %c0_55 = arith.constant 0 : index
      %c0_56 = arith.constant 0 : index
      %71 = vector.load %arg9[%c0_55, %c0_56] : memref<2x128xf32, #tpu.memory_space<vmem>>, vector<2x128xf32>
      %cst_57 = arith.constant 1.600000e+01 : f32
      %72 = vector.broadcast %cst_57 : f32 to vector<2x128xf32>
      %73 = arith.mulf %72, %70 : vector<2x128xf32>
      %74 = arith.mulf %73, %70 : vector<2x128xf32>
      %75 = arith.subf %71, %74 : vector<2x128xf32>
      %cst_58 = arith.constant 1.500000e+01 : f32
      %76 = vector.broadcast %cst_58 : f32 to vector<2x128xf32>
      %77 = arith.divf %75, %76 : vector<2x128xf32>
      %cst_59 = arith.constant 9.99999974E-5 : f32
      %78 = vector.broadcast %cst_59 : f32 to vector<2x128xf32>
      %79 = arith.addf %77, %78 : vector<2x128xf32>
      %80 = math.sqrt %79 : vector<2x128xf32>
      %cst_60 = arith.constant 1.000000e+00 : f32
      %81 = vector.broadcast %cst_60 : f32 to vector<2x128xf32>
      %82 = arith.subf %81, %80 : vector<2x128xf32>
      %cst_61 = arith.constant 0.000000e+00 : f32
      %83 = vector.broadcast %cst_61 : f32 to vector<2x128xf32>
      %84 = arith.maximumf %82, %83 : vector<2x128xf32>
      %85 = vector.shape_cast %84 : vector<2x128xf32> to vector<1x2x128xf32>
      %cst_62 = arith.constant dense<0.000000e+00> : vector<1xf32>
      %86 = vector.multi_reduction <add>, %85, %cst_62 [1, 2] : vector<1x2x128xf32> to vector<1xf32>
      %87 = vector.shape_cast %86 : vector<1xf32> to vector<1x1x1xf32>
      %88 = vector.extract %87[0, 0, 0] : f32 from vector<1x1x1xf32>
      %89 = vector.broadcast %88 : f32 to vector<1x1xf32>
      %cst_63 = arith.constant 1.280000e+02 : f32
      %90 = vector.broadcast %cst_63 : f32 to vector<1x1xf32>
      %91 = arith.divf %89, %90 : vector<1x1xf32>
      %92 = vector.extract_strided_slice %70 {offsets = [0, 0], sizes = [1, 128], strides = [1, 1]} : vector<2x128xf32> to vector<1x128xf32>
      %93 = vector.extract_strided_slice %70 {offsets = [1, 0], sizes = [1, 128], strides = [1, 1]} : vector<2x128xf32> to vector<1x128xf32>
      %c0_64 = arith.constant 0 : index
      %c0_65 = arith.constant 0 : index
      %94 = vector.load %arg10[%c0_64, %c0_65] : memref<128x128xf32, #tpu.memory_space<vmem>>, vector<128x128xf32>
      %cst_66 = arith.constant dense<0.000000e+00> : vector<128x128xf32>
      %95 = tpu.matmul %92, %92, %cst_66 {dimension_numbers = #tpu.dot_dimension_numbers<[0], [0], [1], [1], [0, 1, 1, 1], [], []>} : vector<1x128xf32>, vector<1x128xf32>, vector<128x128xf32> -> vector<128x128xf32>
      %cst_67 = arith.constant 1.600000e+01 : f32
      %96 = vector.broadcast %cst_67 : f32 to vector<128x128xf32>
      %97 = arith.mulf %96, %95 : vector<128x128xf32>
      %98 = arith.subf %94, %97 : vector<128x128xf32>
      %cst_68 = arith.constant 1.500000e+01 : f32
      %99 = vector.broadcast %cst_68 : f32 to vector<128x128xf32>
      %100 = arith.divf %98, %99 : vector<128x128xf32>
      %c0_69 = arith.constant 0 : index
      %c0_70 = arith.constant 0 : index
      %101 = vector.load %arg11[%c0_69, %c0_70] : memref<128x128xf32, #tpu.memory_space<vmem>>, vector<128x128xf32>
      %cst_71 = arith.constant dense<0.000000e+00> : vector<128x128xf32>
      %102 = tpu.matmul %93, %93, %cst_71 {dimension_numbers = #tpu.dot_dimension_numbers<[0], [0], [1], [1], [0, 1, 1, 1], [], []>} : vector<1x128xf32>, vector<1x128xf32>, vector<128x128xf32> -> vector<128x128xf32>
      %cst_72 = arith.constant 1.600000e+01 : f32
      %103 = vector.broadcast %cst_72 : f32 to vector<128x128xf32>
      %104 = arith.mulf %103, %102 : vector<128x128xf32>
      %105 = arith.subf %101, %104 : vector<128x128xf32>
      %cst_73 = arith.constant 1.500000e+01 : f32
      %106 = vector.broadcast %cst_73 : f32 to vector<128x128xf32>
      %107 = arith.divf %105, %106 : vector<128x128xf32>
      %108 = arith.mulf %100, %100 : vector<128x128xf32>
      %109 = vector.shape_cast %108 : vector<128x128xf32> to vector<1x128x128xf32>
      %cst_74 = arith.constant dense<0.000000e+00> : vector<1xf32>
      %110 = vector.multi_reduction <add>, %109, %cst_74 [1, 2] : vector<1x128x128xf32> to vector<1xf32>
      %111 = vector.shape_cast %110 : vector<1xf32> to vector<1x1x1xf32>
      %112 = vector.extract %111[0, 0, 0] : f32 from vector<1x1x1xf32>
      %113 = vector.broadcast %112 : f32 to vector<1x1xf32>
      %114 = arith.mulf %107, %107 : vector<128x128xf32>
      %115 = vector.shape_cast %114 : vector<128x128xf32> to vector<1x128x128xf32>
      %cst_75 = arith.constant dense<0.000000e+00> : vector<1xf32>
      %116 = vector.multi_reduction <add>, %115, %cst_75 [1, 2] : vector<1x128x128xf32> to vector<1xf32>
      %117 = vector.shape_cast %116 : vector<1xf32> to vector<1x1x1xf32>
      %118 = vector.extract %117[0, 0, 0] : f32 from vector<1x1x1xf32>
      %119 = vector.broadcast %118 : f32 to vector<1x1xf32>
      %120 = arith.addf %113, %119 : vector<1x1xf32>
      %121 = arith.mulf %77, %77 : vector<2x128xf32>
      %122 = vector.shape_cast %121 : vector<2x128xf32> to vector<1x2x128xf32>
      %cst_76 = arith.constant dense<0.000000e+00> : vector<1xf32>
      %123 = vector.multi_reduction <add>, %122, %cst_76 [1, 2] : vector<1x2x128xf32> to vector<1xf32>
      %124 = vector.shape_cast %123 : vector<1xf32> to vector<1x1x1xf32>
      %125 = vector.extract %124[0, 0, 0] : f32 from vector<1x1x1xf32>
      %126 = vector.broadcast %125 : f32 to vector<1x1xf32>
      %127 = arith.subf %120, %126 : vector<1x1xf32>
      %cst_77 = arith.constant 1.280000e+02 : f32
      %128 = vector.broadcast %cst_77 : f32 to vector<1x1xf32>
      %129 = arith.divf %127, %128 : vector<1x1xf32>
      %c0_78 = arith.constant 0 : index
      %c0_79 = arith.constant 0 : index
      %130 = vector.load %arg12[%c0_78, %c0_79] : memref<1x128xf32, #tpu.memory_space<vmem>>, vector<1x128xf32>
      %131 = vector.shape_cast %130 : vector<1x128xf32> to vector<1x1x128xf32>
      %cst_80 = arith.constant dense<0.000000e+00> : vector<1xf32>
      %132 = vector.multi_reduction <add>, %131, %cst_80 [1, 2] : vector<1x1x128xf32> to vector<1xf32>
      %133 = vector.shape_cast %132 : vector<1xf32> to vector<1x1x1xf32>
      %134 = vector.extract %133[0, 0, 0] : f32 from vector<1x1x1xf32>
      %135 = vector.broadcast %134 : f32 to vector<1x1xf32>
      %cst_81 = arith.constant 2.048000e+03 : f32
      %136 = vector.broadcast %cst_81 : f32 to vector<1x1xf32>
      %137 = arith.divf %135, %136 : vector<1x1xf32>
      %cst_82 = arith.constant 2.500000e+01 : f32
      %138 = vector.broadcast %cst_82 : f32 to vector<1x1xf32>
      %139 = arith.mulf %138, %137 : vector<1x1xf32>
      %cst_83 = arith.constant 2.500000e+01 : f32
      %140 = vector.broadcast %cst_83 : f32 to vector<1x1xf32>
      %141 = arith.mulf %140, %91 : vector<1x1xf32>
      %142 = arith.addf %139, %141 : vector<1x1xf32>
      %cst_84 = arith.constant 1.000000e+00 : f32
      %143 = vector.broadcast %cst_84 : f32 to vector<1x1xf32>
      %144 = arith.mulf %143, %129 : vector<1x1xf32>
      %145 = arith.addf %142, %144 : vector<1x1xf32>
      %c0_85 = arith.constant 0 : index
      %c0_86 = arith.constant 0 : index
      %146 = vector.load %arg7[%c0_85, %c0_86] : memref<1x1xf32, #tpu.memory_space<vmem>>, vector<1x1xf32>
      tpu.vector_store %arg7[%c0_85, %c0_86], %145 {strides = array<i32>} : memref<1x1xf32, #tpu.memory_space<vmem>>, vector<1x1xf32>,
    } else {
    }
    return
  }
  func.func @transform_0(%arg0: i32) -> (i32, i32, i32) {
    %c0_i32 = arith.constant 0 : i32
    %c0_i32_0 = arith.constant 0 : i32
    %c0_i32_1 = arith.constant 0 : i32
    return %arg0, %c0_i32, %c0_i32_0 : i32, i32, i32
  }
  func.func @transform_1(%arg0: i32) -> (i32, i32, i32) {
    %c0_i32 = arith.constant 0 : i32
    %c0_i32_0 = arith.constant 0 : i32
    %c0_i32_1 = arith.constant 0 : i32
    return %arg0, %c0_i32, %c0_i32_0 : i32, i32, i32
  }
  func.func @transform_2(%arg0: i32) -> (i32, i32) {
    %c0_i32 = arith.constant 0 : i32
    %c0_i32_0 = arith.constant 0 : i32
    %c0_i32_1 = arith.constant 0 : i32
    return %c0_i32, %c0_i32_0 : i32, i32
  }
  func.func @transform_3(%arg0: i32) -> (i32, i32) {
    %c0_i32 = arith.constant 0 : i32
    %c0_i32_0 = arith.constant 0 : i32
    %c0_i32_1 = arith.constant 0 : i32
    return %c0_i32, %c0_i32_0 : i32, i32
  }
  func.func @transform_4(%arg0: i32) -> (i32, i32) {
    %c0_i32 = arith.constant 0 : i32
    %c0_i32_0 = arith.constant 0 : i32
    %c0_i32_1 = arith.constant 0 : i32
    return %c0_i32, %c0_i32_0 : i32, i32
  }
  func.func @transform_5(%arg0: i32) -> (i32, i32) {
    %c0_i32 = arith.constant 0 : i32
    %c0_i32_0 = arith.constant 0 : i32
    %c0_i32_1 = arith.constant 0 : i32
    return %c0_i32, %c0_i32_0 : i32, i32
  }
  func.func @transform_6(%arg0: i32) -> (i32, i32) {
    %c0_i32 = arith.constant 0 : i32
    %c0_i32_0 = arith.constant 0 : i32
    %c0_i32_1 = arith.constant 0 : i32
    return %c0_i32, %c0_i32_0 : i32, i32
  }
}

</mosaic_0001>

<llo_original>
// kernel: tpu_custom_call.1
$region0: #{tpu_custom_call.1}
  #allocation0 [shape = 'u32[]', space=smem, size = 0x4, offset = 0x4, fixed_abs, tag = 'smem constant byte address 0x4 - core index']
  #allocation1 [shape = 'u32[72,128]{1,0:T(1,128)}', space=vmem, size = 0x9000, scoped, tag = 'internal scratch']
  #allocation2 [shape = 'f32[2,128]{1,0:T(2,128)}', space=vmem, size = 0x400, scoped, tag = 'scratch operand']
  #allocation3 [shape = 'f32[2,128]{1,0:T(2,128)}', space=vmem, size = 0x400, scoped, tag = 'scratch operand']
  #allocation4 [shape = 'f32[128,128]{1,0:T(8,128)}', space=vmem, size = 0x10000, scoped, tag = 'scratch operand']
  #allocation5 [shape = 'f32[128,128]{1,0:T(8,128)}', space=vmem, size = 0x10000, scoped, tag = 'scratch operand']
  #allocation6 [shape = 'f32[1,128]{1,0:T(1,128)}', space=vmem, size = 0x200, scoped, tag = 'scratch operand']
  %s0 = inlined_call_operand.hbm [shape: f32[16,4,256], index: 0, kind: input, shape index: {}]
  %s1 = inlined_call_operand.hbm [shape: f32[16,4,256], index: 1, kind: input, shape index: {}]
  %s2 = inlined_call_operand.hbm [shape: bf16[4,128], index: 2, kind: input, shape index: {}]
  %s3 = inlined_call_operand.hbm [shape: bf16[128,128], index: 3, kind: input, shape index: {}]
  %s4 = inlined_call_operand.hbm [shape: bf16[128,128], index: 4, kind: input, shape index: {}]
  %s5 = inlined_call_operand.hbm [shape: bf16[128,128], index: 5, kind: input, shape index: {}]
  %s6 = inlined_call_operand.hbm [shape: f32[1,1], index: 6, kind: output, shape index: {}]
  %s7 = sld [smem:[#allocation0]]
  $region89: #{tpu_custom_call.1} parent=0
    _
  %s9 = ssub.s32 1, %s7
  %s10 = scalar_select 0, %s9, %s7
  $region1: #{tpu_custom_call.1} parent=0
    #allocation7 [shape = 'u8[65536]{0}', space=vmem, size = 0x10000, scoped, tag = 'input window, operand 0']
    #allocation8 [shape = 's32[2]{0}', space=sflag, size = 0x8, scoped, tag = 'scoped memory for tpu_custom_call.1']
    #allocation9 [shape = 's32[2]{0}', space=sflag, size = 0x8, scoped, tag = 'scoped memory for tpu_custom_call.1']
    #allocation10 [shape = 'u8[65536]{0}', space=vmem, size = 0x10000, scoped, tag = 'input window, operand 1']
    #allocation11 [shape = 's32[2]{0}', space=sflag, size = 0x8, scoped, tag = 'scoped memory for tpu_custom_call.1']
    #allocation12 [shape = 'u8[1024]{0}', space=vmem, size = 0x400, scoped, tag = 'input window, operand 2, single buffered']
    #allocation13 [shape = 'u8[32768]{0}', space=vmem, size = 0x8000, scoped, tag = 'input window, operand 3, single buffered']
    #allocation14 [shape = 's32[1]{0}', space=sflag, size = 0x4, scoped, tag = 'scoped memory for tpu_custom_call.1']
    #allocation15 [shape = 'u8[32768]{0}', space=vmem, size = 0x8000, scoped, tag = 'input window, operand 4, single buffered']
    #allocation16 [shape = 'u8[32768]{0}', space=vmem, size = 0x8000, scoped, tag = 'input window, operand 5, single buffered']
    #allocation17 [shape = 's32[1]{0}', space=sflag, size = 0x4, scoped, tag = 'scoped memory for tpu_custom_call.1']
    #allocation18 [shape = 'u8[512]{0}', space=vmem, size = 0x400, scoped, tag = 'output window, operand 0, single buffered']
    %11 = vsyncpa [#allocation8], 0
    %s12 = scalar_lea.sflag [#allocation8], 1
    %13 = vsyncpa %s12, 0
    %14 = vsyncpa [#allocation11], 0
    %s15 = scalar_lea.sflag [#allocation11], 1
    %16 = vsyncpa %s15, 0
    %17 = vsyncpa [#allocation14], 0
    %18 = vsyncpa [#allocation17], 0
    %19 = vsyncpa [#allocation9], 0
    loop: start=0, step=1, limit=4
    $region2: #{tpu_custom_call.1} parent=1 // loop_pre_header
      _
    $region3: #{tpu_custom_call.1} parent=1 // loop_header
      %s21 = sphi 0, %s25
      %p22 = scmp.ge.s32.totalorder %s21, 4
      %s31 = sphi 0, %s33
      %s34 = sphi 0, %s31
      %s35 = sphi 0, %s34
      %s51 = sphi 0, %s35
      %s57 = sphi 0, %s59
      %s60 = sphi 0, %s57
      %s61 = sphi 0, %s60
      %s77 = sphi 0, %s61
      %s81 = sphi 0, %s81
      %s83 = sphi 0, %s81
      %s84 = sphi 0, %s83
      %s98 = sphi 0, %s84
      %s102 = sphi 0, %s102
      %s104 = sphi 0, %s102
      %s105 = sphi 0, %s104
      %s119 = sphi 0, %s105
      %s123 = sphi 0, %s123
      %s125 = sphi 0, %s123
      %s126 = sphi 0, %s125
      %s140 = sphi 0, %s126
      %s144 = sphi 0, %s144
      %s146 = sphi 0, %s144
      %s147 = sphi 0, %s146
      %s161 = sphi 0, %s147
      %s165 = sphi 0, %s165
      %s167 = sphi 0, %s165
      %s168 = sphi 0, %s167
      %s182 = sphi 0, %s168
    $region4: #{tpu_custom_call.1} parent=1 // loop_header_branch
      %24 = sbr.rel (%p22) target = $region8
    $region5: #{tpu_custom_call.1} parent=1 // loop_body
      %s26 = ssub.s32 %s21, 1
      %s27 = ssub.s32 %s21, 2
      %s28 = sadd.s32 %s21, 1
      %s29 = ssub.s32 %s21, %s28
      %p30 = scmp.eq.s32.totalorder %s29, 0
      %s32 = sadd.s32 %s31, 1
      %s33 = scalar_select %p30, %s31, %s32
      %p36 = pneg %p30
      %p37 = scmp.eq.s32.totalorder %s21, 1
      %p38 = por %p36, %p37
      %p39 = scmp.ne.s32.totalorder %s31, %s34
      %p40 = scmp.eq.s32.totalorder %s21, 0
      %p41 = por %p39, %p40
      %p42 = scmp.ne.s32.totalorder %s31, %s34
      %p43 = scmp.eq.s32.totalorder %s26, 1
      %p44 = por %p42, %p43
      %p45 = scmp.ne.s32.totalorder %s34, %s35
      %p46 = scmp.eq.s32.totalorder %s26, 0
      %p47 = por %p45, %p46
      %p48 = scmp.ne.s32.totalorder %s34, %s35
      %p49 = scmp.eq.s32.totalorder %s27, 1
      %p50 = por %p48, %p49
      %p52 = scmp.ne.s32.totalorder %s35, %s51
      %p53 = scmp.eq.s32.totalorder %s27, 0
      %p54 = por %p52, %p53
      %s55 = ssub.s32 %s21, %s28
      %p56 = scmp.eq.s32.totalorder %s55, 0
      %s58 = sadd.s32 %s57, 1
      %s59 = scalar_select %p56, %s57, %s58
      %p62 = pneg %p56
      %p63 = scmp.eq.s32.totalorder %s21, 1
      %p64 = por %p62, %p63
      %p65 = scmp.ne.s32.totalorder %s57, %s60
      %p66 = scmp.eq.s32.totalorder %s21, 0
      %p67 = por %p65, %p66
      %p68 = scmp.ne.s32.totalorder %s57, %s60
      %p69 = scmp.eq.s32.totalorder %s26, 1
      %p70 = por %p68, %p69
      %p71 = scmp.ne.s32.totalorder %s60, %s61
      %p72 = scmp.eq.s32.totalorder %s26, 0
      %p73 = por %p71, %p72
      %p74 = scmp.ne.s32.totalorder %s60, %s61
      %p75 = scmp.eq.s32.totalorder %s27, 1
      %p76 = por %p74, %p75
      %p78 = scmp.ne.s32.totalorder %s61, %s77
      %p79 = scmp.eq.s32.totalorder %s27, 0
      %p80 = por %p78, %p79
      %s82 = sadd.s32 %s81, 1
      %p85 = scmp.eq.s32.totalorder %s21, 1
      %p86 = scmp.ne.s32.totalorder %s81, %s83
      %p87 = scmp.eq.s32.totalorder %s21, 0
      %p88 = por %p86, %p87
      %p89 = scmp.ne.s32.totalorder %s81, %s83
      %p90 = scmp.eq.s32.totalorder %s26, 1
      %p91 = por %p89, %p90
      %p92 = scmp.ne.s32.totalorder %s83, %s84
      %p93 = scmp.eq.s32.totalorder %s26, 0
      %p94 = por %p92, %p93
      %p95 = scmp.ne.s32.totalorder %s83, %s84
      %p96 = scmp.eq.s32.totalorder %s27, 1
      %p97 = por %p95, %p96
      %p99 = scmp.ne.s32.totalorder %s84, %s98
      %p100 = scmp.eq.s32.totalorder %s27, 0
      %p101 = por %p99, %p100
      %s103 = sadd.s32 %s102, 1
      %p106 = scmp.eq.s32.totalorder %s21, 1
      %p107 = scmp.ne.s32.totalorder %s102, %s104
      %p108 = scmp.eq.s32.totalorder %s21, 0
      %p109 = por %p107, %p108
      %p110 = scmp.ne.s32.totalorder %s102, %s104
      %p111 = scmp.eq.s32.totalorder %s26, 1
      %p112 = por %p110, %p111
      %p113 = scmp.ne.s32.totalorder %s104, %s105
      %p114 = scmp.eq.s32.totalorder %s26, 0
      %p115 = por %p113, %p114
      %p116 = scmp.ne.s32.totalorder %s104, %s105
      %p117 = scmp.eq.s32.totalorder %s27, 1
      %p118 = por %p116, %p117
      %p120 = scmp.ne.s32.totalorder %s105, %s119
      %p121 = scmp.eq.s32.totalorder %s27, 0
      %p122 = por %p120, %p121
      %s124 = sadd.s32 %s123, 1
      %p127 = scmp.eq.s32.totalorder %s21, 1
      %p128 = scmp.ne.s32.totalorder %s123, %s125
      %p129 = scmp.eq.s32.totalorder %s21, 0
      %p130 = por %p128, %p129
      %p131 = scmp.ne.s32.totalorder %s123, %s125
      %p132 = scmp.eq.s32.totalorder %s26, 1
      %p133 = por %p131, %p132
      %p134 = scmp.ne.s32.totalorder %s125, %s126
      %p135 = scmp.eq.s32.totalorder %s26, 0
      %p136 = por %p134, %p135
      %p137 = scmp.ne.s32.totalorder %s125, %s126
      %p138 = scmp.eq.s32.totalorder %s27, 1
      %p139 = por %p137, %p138
      %p141 = scmp.ne.s32.totalorder %s126, %s140
      %p142 = scmp.eq.s32.totalorder %s27, 0
      %p143 = por %p141, %p142
      %s145 = sadd.s32 %s144, 1
      %p148 = scmp.eq.s32.totalorder %s21, 1
      %p149 = scmp.ne.s32.totalorder %s144, %s146
      %p150 = scmp.eq.s32.totalorder %s21, 0
      %p151 = por %p149, %p150
      %p152 = scmp.ne.s32.totalorder %s144, %s146
      %p153 = scmp.eq.s32.totalorder %s26, 1
      %p154 = por %p152, %p153
      %p155 = scmp.ne.s32.totalorder %s146, %s147
      %p156 = scmp.eq.s32.totalorder %s26, 0
      %p157 = por %p155, %p156
      %p158 = scmp.ne.s32.totalorder %s146, %s147
      %p159 = scmp.eq.s32.totalorder %s27, 1
      %p160 = por %p158, %p159
      %p162 = scmp.ne.s32.totalorder %s147, %s161
      %p163 = scmp.eq.s32.totalorder %s27, 0
      %p164 = por %p162, %p163
      %s166 = sadd.s32 %s165, 1
      %p169 = scmp.eq.s32.totalorder %s21, 1
      %p170 = scmp.ne.s32.totalorder %s165, %s167
      %p171 = scmp.eq.s32.totalorder %s21, 0
      %p172 = por %p170, %p171
      %p173 = scmp.ne.s32.totalorder %s165, %s167
      %p174 = scmp.eq.s32.totalorder %s26, 1
      %p175 = por %p173, %p174
      %p176 = scmp.ne.s32.totalorder %s167, %s168
      %p177 = scmp.eq.s32.totalorder %s26, 0
      %p178 = por %p176, %p177
      %p179 = scmp.ne.s32.totalorder %s167, %s168
      %p180 = scmp.eq.s32.totalorder %s27, 1
      %p181 = por %p179, %p180
      %p183 = scmp.ne.s32.totalorder %s168, %s182
      %p184 = scmp.eq.s32.totalorder %s27, 0
      %p185 = por %p183, %p184
      %p186 = scmp.le.s32.totalorder 1, %s21
      %p187 = scmp.lt.s32.totalorder %s21, 3
      %p188 = pnand %p186, %p187
      %p189 = pneg %p188
      // Predicated region
      $region9: #{tpu_custom_call.1} parent=5 // pred_check
        _
      $region10: #{tpu_custom_call.1} parent=5 // pred_check_branch
        %191 = sbr.rel (%p188) target = $region12
      $region11: #{tpu_custom_call.1} parent=5 // pred_region
        %s192 = ssub.s32 %s21, 1
        // Predicated region
        $region13: #{tpu_custom_call.1} parent=11 // pred_check
          %p193 = pneg %p94
        $region14: #{tpu_custom_call.1} parent=11 // pred_check_branch
          %195 = sbr.rel (%p193) target = $region16
        $region15: #{tpu_custom_call.1} parent=11 // pred_region
          %197 = vsyncadd [#allocation11], 0
          %s199 = sshll.u32 %s2, 4
          %s200 = int_to_ptr.hbm [resolvable:$true] %s199
          %s201 = sshll.u32 [#allocation12], 4
          %s202 = int_to_ptr.vmem [resolvable:$true] %s201
          %204 = dma.hbm_to_vmem [thread:$0]  %s200, 32, %s202, [#allocation11]
        $region16: #{tpu_custom_call.1} parent=11 // pred_fallthru
          _
        // Predicated region
        $region17: #{tpu_custom_call.1} parent=11 // pred_check
          %p205 = pneg %p115
        $region18: #{tpu_custom_call.1} parent=11 // pred_check_branch
          %207 = sbr.rel (%p205) target = $region20
        $region19: #{tpu_custom_call.1} parent=11 // pred_region
          %209 = vsyncadd [#allocation14], 0
          %s210 = sshll.u32 %s3, 4
          %s211 = int_to_ptr.hbm [resolvable:$true] %s210
          %s212 = sshll.u32 [#allocation13], 4
          %s213 = int_to_ptr.vmem [resolvable:$true] %s212
          %218 = dma.hbm_to_vmem [thread:$0]  %s211, 1024, %s213, [#allocation14], 64, 64, 4
        $region20: #{tpu_custom_call.1} parent=11 // pred_fallthru
          _
        // Predicated region
        $region21: #{tpu_custom_call.1} parent=11 // pred_check
          %p219 = pneg %p136
        $region22: #{tpu_custom_call.1} parent=11 // pred_check_branch
          %221 = sbr.rel (%p219) target = $region24
        $region23: #{tpu_custom_call.1} parent=11 // pred_region
          %223 = vsyncadd [#allocation14], 0
          %s224 = sshll.u32 %s4, 4
          %s225 = int_to_ptr.hbm [resolvable:$true] %s224
          %s226 = sshll.u32 [#allocation15], 4
          %s227 = int_to_ptr.vmem [resolvable:$true] %s226
          %232 = dma.hbm_to_vmem [thread:$0]  %s225, 1024, %s227, [#allocation14], 64, 64, 4
        $region24: #{tpu_custom_call.1} parent=11 // pred_fallthru
          _
        // Predicated region
        $region25: #{tpu_custom_call.1} parent=11 // pred_check
          %p233 = pneg %p157
        $region26: #{tpu_custom_call.1} parent=11 // pred_check_branch
          %235 = sbr.rel (%p233) target = $region28
        $region27: #{tpu_custom_call.1} parent=11 // pred_region
          %237 = vsyncadd [#allocation17], 0
          %s238 = sshll.u32 %s5, 4
          %s239 = int_to_ptr.hbm [resolvable:$true] %s238
          %s240 = sshll.u32 [#allocation16], 4
          %s241 = int_to_ptr.vmem [resolvable:$true] %s240
          %246 = dma.hbm_to_vmem [thread:$0]  %s239, 1024, %s241, [#allocation17], 64, 64, 4
        $region28: #{tpu_custom_call.1} parent=11 // pred_fallthru
          _
      $region12: #{tpu_custom_call.1} parent=5 // pred_fallthru
        _
      %p247 = scmp.lt.s32.totalorder %s21, 2
      // Predicated region
      $region29: #{tpu_custom_call.1} parent=5 // pred_check
        %p248 = pneg %p247
      $region30: #{tpu_custom_call.1} parent=5 // pred_check_branch
        %250 = sbr.rel (%p248) target = $region32
      $region31: #{tpu_custom_call.1} parent=5 // pred_region
        // Predicated region
        $region33: #{tpu_custom_call.1} parent=31 // pred_check
          %p251 = pneg %p41
        $region34: #{tpu_custom_call.1} parent=31 // pred_check_branch
          %253 = sbr.rel (%p251) target = $region36
        $region35: #{tpu_custom_call.1} parent=31 // pred_region
          %s254 = sand.u32 %s31, 1
          %s255 = scalar_lea.sflag [#allocation8], %s254
          %s256 = sand.u32 %s31, 1
          %s257 = smul.addr %s256, 64
          %s258 = scalar_lea.vmem [#allocation7], %s257
          %s259 = smul.u32 8, %s21
          %261 = vsyncadd %s255, 0
          %s262 = smul.addr %s259, 2
          %s263 = smul.addr %s262, 4
          %s264 = scalar_lea.hbm %s0, %s263
          %s265 = sshll.u32 %s264, 4
          %s266 = int_to_ptr.hbm [resolvable:$true] %s265
          %s267 = sshll.u32 %s258, 4
          %s268 = int_to_ptr.vmem [resolvable:$true] %s267
          %273 = dma.hbm_to_vmem [thread:$0]  %s266, 1024, %s268, %s255, 128, 128, 8
        $region36: #{tpu_custom_call.1} parent=31 // pred_fallthru
          _
        // Predicated region
        $region37: #{tpu_custom_call.1} parent=31 // pred_check
          %p274 = pneg %p67
        $region38: #{tpu_custom_call.1} parent=31 // pred_check_branch
          %276 = sbr.rel (%p274) target = $region40
        $region39: #{tpu_custom_call.1} parent=31 // pred_region
          %s277 = sand.u32 %s21, 1
          %s278 = scalar_lea.sflag [#allocation11], %s277
          %s279 = sand.u32 %s57, 1
          %s280 = smul.addr %s279, 64
          %s281 = scalar_lea.vmem [#allocation10], %s280
          %s282 = smul.u32 8, %s21
          %284 = vsyncadd %s278, 0
          %s285 = smul.addr %s282, 2
          %s286 = smul.addr %s285, 4
          %s287 = scalar_lea.hbm %s1, %s286
          %s288 = sshll.u32 %s287, 4
          %s289 = int_to_ptr.hbm [resolvable:$true] %s288
          %s290 = sshll.u32 %s281, 4
          %s291 = int_to_ptr.vmem [resolvable:$true] %s290
          %296 = dma.hbm_to_vmem [thread:$0]  %s289, 1024, %s291, %s278, 128, 128, 8
        $region40: #{tpu_custom_call.1} parent=31 // pred_fallthru
          _
      $region32: #{tpu_custom_call.1} parent=5 // pred_fallthru
        _
      %p297 = scmp.le.s32.totalorder 1, %s21
      %p298 = scmp.lt.s32.totalorder %s21, 3
      %p299 = pnand %p297, %p298
      %p300 = pneg %p299
      // Predicated region
      $region41: #{tpu_custom_call.1} parent=5 // pred_check
        _
      $region42: #{tpu_custom_call.1} parent=5 // pred_check_branch
        %302 = sbr.rel (%p299) target = $region44
      $region43: #{tpu_custom_call.1} parent=5 // pred_region
        %s303 = ssub.s32 %s21, 1
        %s304 = sand.u32 %s34, 1
        %s305 = scalar_lea.sflag [#allocation8], %s304
        %s306 = sand.u32 %s34, 1
        %s307 = smul.addr %s306, 64
        %s308 = scalar_lea.vmem [#allocation7], %s307
        // Predicated region
        $region45: #{tpu_custom_call.1} parent=43 // pred_check
          %p309 = pneg %p47
        $region46: #{tpu_custom_call.1} parent=43 // pred_check_branch
          %311 = sbr.rel (%p309) target = $region48
        $region47: #{tpu_custom_call.1} parent=43 // pred_region
          %313 = dma.done %s305, 1024
        $region48: #{tpu_custom_call.1} parent=43 // pred_fallthru
          _
        %s314 = sand.u32 %s26, 1
        %s315 = scalar_lea.sflag [#allocation11], %s314
        %s316 = sand.u32 %s60, 1
        %s317 = smul.addr %s316, 64
        %s318 = scalar_lea.vmem [#allocation10], %s317
        // Predicated region
        $region49: #{tpu_custom_call.1} parent=43 // pred_check
          %p319 = pneg %p73
        $region50: #{tpu_custom_call.1} parent=43 // pred_check_branch
          %321 = sbr.rel (%p319) target = $region52
        $region51: #{tpu_custom_call.1} parent=43 // pred_region
          %323 = dma.done %s315, 1024
        $region52: #{tpu_custom_call.1} parent=43 // pred_fallthru
          _
        // Predicated region
        $region53: #{tpu_custom_call.1} parent=43 // pred_check
          %p324 = pneg %p94
        $region54: #{tpu_custom_call.1} parent=43 // pred_check_branch
          %326 = sbr.rel (%p324) target = $region56
        $region55: #{tpu_custom_call.1} parent=43 // pred_region
          %328 = dma.done [#allocation11], 32
        $region56: #{tpu_custom_call.1} parent=43 // pred_fallthru
          _
        // Predicated region
        $region57: #{tpu_custom_call.1} parent=43 // pred_check
          %p329 = pneg %p115
        $region58: #{tpu_custom_call.1} parent=43 // pred_check_branch
          %331 = sbr.rel (%p329) target = $region60
        $region59: #{tpu_custom_call.1} parent=43 // pred_region
          %333 = dma.done [#allocation14], 1024
        $region60: #{tpu_custom_call.1} parent=43 // pred_fallthru
          _
        // Predicated region
        $region61: #{tpu_custom_call.1} parent=43 // pred_check
          %p334 = pneg %p136
        $region62: #{tpu_custom_call.1} parent=43 // pred_check_branch
          %336 = sbr.rel (%p334) target = $region64
        $region63: #{tpu_custom_call.1} parent=43 // pred_region
          %338 = dma.done [#allocation14], 1024
        $region64: #{tpu_custom_call.1} parent=43 // pred_fallthru
          _
        // Predicated region
        $region65: #{tpu_custom_call.1} parent=43 // pred_check
          %p339 = pneg %p157
        $region66: #{tpu_custom_call.1} parent=43 // pred_check_branch
          %341 = sbr.rel (%p339) target = $region68
        $region67: #{tpu_custom_call.1} parent=43 // pred_region
          %343 = dma.done [#allocation17], 1024
        $region68: #{tpu_custom_call.1} parent=43 // pred_fallthru
          _
        %s344 = sand.u32 %s34, 1
        %s345 = scalar_lea.sflag [#allocation8], %s344
        %s346 = sand.u32 %s34, 1
        %s347 = smul.addr %s346, 64
        %s348 = scalar_lea.vmem [#allocation7], %s347
        %p349 = pneg %p47
        %p350 = pneg %p44
        %s351 = sand.u32 %s26, 1
        %s352 = scalar_lea.sflag [#allocation11], %s351
        %s353 = sand.u32 %s60, 1
        %s354 = smul.addr %s353, 64
        %s355 = scalar_lea.vmem [#allocation10], %s354
        %p356 = pneg %p73
        %p357 = pneg %p70
        %p358 = pneg %p94
        %p359 = pneg %p91
        %p360 = pneg %p115
        %p361 = pneg %p112
        %p362 = pneg %p136
        %p363 = pneg %p133
        %p364 = pneg %p157
        %p365 = pneg %p154
        %p366 = pneg %p178
        %p367 = pneg %p175
        %s368 = smul.u32 8, %s26
        %s369 = smul.u32 8, %s26
        %p371 = scmp.eq.s32.totalorder %s26, 0
        // Predicated region
        $region69: #{tpu_custom_call.1} parent=43 // pred_check
          %p372 = pneg %p371
        $region70: #{tpu_custom_call.1} parent=43 // pred_check_branch
          %374 = sbr.rel (%p372) target = $region72
        $region71: #{tpu_custom_call.1} parent=43 // pred_region
          %375 = vst [vmem:[#allocation2] sm:$0x3] 0.0
          %376 = vst [vmem:[#allocation3] sm:$0x3] 0.0
          %377 = vst [vmem:[#allocation4] sm:$0xff] 0.0
          %378 = vst [vmem:[#allocation4 + $0x8] sm:$0xff] 0.0
          %379 = vst [vmem:[#allocation4 + $0x10] sm:$0xff] 0.0
          %380 = vst [vmem:[#allocation4 + $0x18] sm:$0xff] 0.0
          %381 = vst [vmem:[#allocation4 + $0x20] sm:$0xff] 0.0
          %382 = vst [vmem:[#allocation4 + $0x28] sm:$0xff] 0.0
          %383 = vst [vmem:[#allocation4 + $0x30] sm:$0xff] 0.0
          %384 = vst [vmem:[#allocation4 + $0x38] sm:$0xff] 0.0
          %385 = vst [vmem:[#allocation4 + $0x40] sm:$0xff] 0.0
          %386 = vst [vmem:[#allocation4 + $0x48] sm:$0xff] 0.0
          %387 = vst [vmem:[#allocation4 + $0x50] sm:$0xff] 0.0
          %388 = vst [vmem:[#allocation4 + $0x58] sm:$0xff] 0.0
          %389 = vst [vmem:[#allocation4 + $0x60] sm:$0xff] 0.0
          %390 = vst [vmem:[#allocation4 + $0x68] sm:$0xff] 0.0
          %391 = vst [vmem:[#allocation4 + $0x70] sm:$0xff] 0.0
          %392 = vst [vmem:[#allocation4 + $0x78] sm:$0xff] 0.0
          %393 = vst [vmem:[#allocation5] sm:$0xff] 0.0
          %394 = vst [vmem:[#allocation5 + $0x8] sm:$0xff] 0.0
          %395 = vst [vmem:[#allocation5 + $0x10] sm:$0xff] 0.0
          %396 = vst [vmem:[#allocation5 + $0x18] sm:$0xff] 0.0
          %397 = vst [vmem:[#allocation5 + $0x20] sm:$0xff] 0.0
          %398 = vst [vmem:[#allocation5 + $0x28] sm:$0xff] 0.0
          %399 = vst [vmem:[#allocation5 + $0x30] sm:$0xff] 0.0
          %400 = vst [vmem:[#allocation5 + $0x38] sm:$0xff] 0.0
          %401 = vst [vmem:[#allocation5 + $0x40] sm:$0xff] 0.0
          %402 = vst [vmem:[#allocation5 + $0x48] sm:$0xff] 0.0
          %403 = vst [vmem:[#allocation5 + $0x50] sm:$0xff] 0.0
          %404 = vst [vmem:[#allocation5 + $0x58] sm:$0xff] 0.0
          %405 = vst [vmem:[#allocation5 + $0x60] sm:$0xff] 0.0
          %406 = vst [vmem:[#allocation5 + $0x68] sm:$0xff] 0.0
          %407 = vst [vmem:[#allocation5 + $0x70] sm:$0xff] 0.0
          %408 = vst [vmem:[#allocation5 + $0x78] sm:$0xff] 0.0
          %409 = vst [vmem:[#allocation6] sm:$0x1] 0.0
        $region72: #{tpu_custom_call.1} parent=43 // pred_fallthru
          _
        %v410 = vld [vmem:[%s308] sm:$0xff]
        %v411 = vld [vmem:[%s308 + $0x8] sm:$0xff]
        %v412 = vld [vmem:[%s308 + $0x10] sm:$0xff]
        %v413 = vld [vmem:[%s308 + $0x18] sm:$0xff]
        %v414 = vld [vmem:[%s308 + $0x20] sm:$0xff]
        %v415 = vld [vmem:[%s308 + $0x28] sm:$0xff]
        %v416 = vld [vmem:[%s308 + $0x30] sm:$0xff]
        %v417 = vld [vmem:[%s308 + $0x38] sm:$0xff]
        %426 = vst [vmem:[#allocation1] ss:$2 sm:$0xff] %v410
        %v427 = vld.sshfl [vmem:[#allocation1] sm:$0xff pattern:$0x75316420]
        %v428 = vld.sshfl [vmem:[#allocation1 + $0x8] sm:$0xff pattern:$0x75316420]
        %s429 = scalar_lea.vmem [#allocation1], 16
        %430 = vst [vmem:[%s429] ss:$2 sm:$0xff] %v411
        %v431 = vld.sshfl [vmem:[#allocation1 + $0x10] sm:$0xff pattern:$0x75316420]
        %v432 = vld.sshfl [vmem:[#allocation1 + $0x18] sm:$0xff pattern:$0x75316420]
        %s433 = scalar_lea.vmem [#allocation1], 32
        %434 = vst [vmem:[%s433] ss:$2 sm:$0xff] %v412
        %v435 = vld.sshfl [vmem:[#allocation1 + $0x20] sm:$0xff pattern:$0x75316420]
        %v436 = vld.sshfl [vmem:[#allocation1 + $0x28] sm:$0xff pattern:$0x75316420]
        %s437 = scalar_lea.vmem [#allocation1], 48
        %438 = vst [vmem:[%s437] ss:$2 sm:$0xff] %v413
        %v439 = vld.sshfl [vmem:[#allocation1 + $0x30] sm:$0xff pattern:$0x75316420]
        %v440 = vld.sshfl [vmem:[#allocation1 + $0x38] sm:$0xff pattern:$0x75316420]
        %441 = vst [vmem:[#allocation1] ss:$2 sm:$0xff] %v414
        %v442 = vld.sshfl [vmem:[#allocation1] sm:$0xff pattern:$0x75316420]
        %v443 = vld.sshfl [vmem:[#allocation1 + $0x8] sm:$0xff pattern:$0x75316420]
        %444 = vst [vmem:[%s429] ss:$2 sm:$0xff] %v415
        %v445 = vld.sshfl [vmem:[#allocation1 + $0x10] sm:$0xff pattern:$0x75316420]
        %v446 = vld.sshfl [vmem:[#allocation1 + $0x18] sm:$0xff pattern:$0x75316420]
        %447 = vst [vmem:[%s433] ss:$2 sm:$0xff] %v416
        %v448 = vld.sshfl [vmem:[#allocation1 + $0x20] sm:$0xff pattern:$0x75316420]
        %v449 = vld.sshfl [vmem:[#allocation1 + $0x28] sm:$0xff pattern:$0x75316420]
        %450 = vst [vmem:[%s437] ss:$2 sm:$0xff] %v417
        %v451 = vld.sshfl [vmem:[#allocation1 + $0x30] sm:$0xff pattern:$0x75316420]
        %v452 = vld.sshfl [vmem:[#allocation1 + $0x38] sm:$0xff pattern:$0x75316420]
        %vm469 = vcmask 1043456
        %v470 = vsel %vm469, %v427, 0.0
        %v471 = vsel %vm469, %v428, 0.0
        %v472 = vadd.f32 %v470, %v471
        %473 = vadd.xlane.f32.xlu0 %v472
        %v474 = vpop.xlane.xlu0 %473
        %v475 = vsel %vm469, %v431, 0.0
        %v476 = vsel %vm469, %v432, 0.0
        %v477 = vadd.f32 %v475, %v476
        %478 = vadd.xlane.f32.xlu0 %v477
        %v479 = vpop.xlane.xlu0 %478
        %v480 = vsel %vm469, %v435, 0.0
        %v481 = vsel %vm469, %v436, 0.0
        %v482 = vadd.f32 %v480, %v481
        %483 = vadd.xlane.f32.xlu0 %v482
        %v484 = vpop.xlane.xlu0 %483
        %v485 = vsel %vm469, %v439, 0.0
        %v486 = vsel %vm469, %v440, 0.0
        %v487 = vadd.f32 %v485, %v486
        %488 = vadd.xlane.f32.xlu0 %v487
        %v489 = vpop.xlane.xlu0 %488
        %v490 = vsel %vm469, %v442, 0.0
        %v491 = vsel %vm469, %v443, 0.0
        %v492 = vadd.f32 %v490, %v491
        %493 = vadd.xlane.f32.xlu0 %v492
        %v494 = vpop.xlane.xlu0 %493
        %v495 = vsel %vm469, %v445, 0.0
        %v496 = vsel %vm469, %v446, 0.0
        %v497 = vadd.f32 %v495, %v496
        %498 = vadd.xlane.f32.xlu0 %v497
        %v499 = vpop.xlane.xlu0 %498
        %v500 = vsel %vm469, %v448, 0.0
        %v501 = vsel %vm469, %v449, 0.0
        %v502 = vadd.f32 %v500, %v501
        %503 = vadd.xlane.f32.xlu0 %v502
        %v504 = vpop.xlane.xlu0 %503
        %v505 = vsel %vm469, %v451, 0.0
        %v506 = vsel %vm469, %v452, 0.0
        %v507 = vadd.f32 %v505, %v506
        %508 = vadd.xlane.f32.xlu0 %v507
        %v509 = vpop.xlane.xlu0 %508
        %v510 = vrcp.pop 256.0
        %v511 = vmul.f32 256.0, %v510
        %v512 = vsub.f32 1.0, %v511
        %v513 = vmul.f32 %v510, %v512
        %v514 = vadd.f32 %v510, %v513
        %vm515 = vweird.f32 %v510
        %v516 = vsel %vm515, %v510, %v514
        %v517 = vmul.f32 %v474, %v516
        %v518 = vmul.f32 %v479, %v516
        %v519 = vmul.f32 %v484, %v516
        %v520 = vmul.f32 %v489, %v516
        %v521 = vmul.f32 %v494, %v516
        %v522 = vmul.f32 %v499, %v516
        %v523 = vmul.f32 %v504, %v516
        %v524 = vmul.f32 %v509, %v516
        %v525 = vld [vmem:[%s318] sm:$0xff]
        %v526 = vld [vmem:[%s318 + $0x8] sm:$0xff]
        %v527 = vld [vmem:[%s318 + $0x10] sm:$0xff]
        %v528 = vld [vmem:[%s318 + $0x18] sm:$0xff]
        %v529 = vld [vmem:[%s318 + $0x20] sm:$0xff]
        %v530 = vld [vmem:[%s318 + $0x28] sm:$0xff]
        %v531 = vld [vmem:[%s318 + $0x30] sm:$0xff]
        %v532 = vld [vmem:[%s318 + $0x38] sm:$0xff]
        %541 = vst [vmem:[#allocation1] ss:$2 sm:$0xff] %v525
        %v542 = vld.sshfl [vmem:[#allocation1] sm:$0xff pattern:$0x75316420]
        %v543 = vld.sshfl [vmem:[#allocation1 + $0x8] sm:$0xff pattern:$0x75316420]
        %s544 = scalar_lea.vmem [#allocation1], 16
        %545 = vst [vmem:[%s544] ss:$2 sm:$0xff] %v526
        %v546 = vld.sshfl [vmem:[#allocation1 + $0x10] sm:$0xff pattern:$0x75316420]
        %v547 = vld.sshfl [vmem:[#allocation1 + $0x18] sm:$0xff pattern:$0x75316420]
        %s548 = scalar_lea.vmem [#allocation1], 32
        %549 = vst [vmem:[%s548] ss:$2 sm:$0xff] %v527
        %v550 = vld.sshfl [vmem:[#allocation1 + $0x20] sm:$0xff pattern:$0x75316420]
        %v551 = vld.sshfl [vmem:[#allocation1 + $0x28] sm:$0xff pattern:$0x75316420]
        %s552 = scalar_lea.vmem [#allocation1], 48
        %553 = vst [vmem:[%s552] ss:$2 sm:$0xff] %v528
        %v554 = vld.sshfl [vmem:[#allocation1 + $0x30] sm:$0xff pattern:$0x75316420]
        %v555 = vld.sshfl [vmem:[#allocation1 + $0x38] sm:$0xff pattern:$0x75316420]
        %556 = vst [vmem:[#allocation1] ss:$2 sm:$0xff] %v529
        %v557 = vld.sshfl [vmem:[#allocation1] sm:$0xff pattern:$0x75316420]
        %v558 = vld.sshfl [vmem:[#allocation1 + $0x8] sm:$0xff pattern:$0x75316420]
        %559 = vst [vmem:[%s544] ss:$2 sm:$0xff] %v530
        %v560 = vld.sshfl [vmem:[#allocation1 + $0x10] sm:$0xff pattern:$0x75316420]
        %v561 = vld.sshfl [vmem:[#allocation1 + $0x18] sm:$0xff pattern:$0x75316420]
        %562 = vst [vmem:[%s548] ss:$2 sm:$0xff] %v531
        %v563 = vld.sshfl [vmem:[#allocation1 + $0x20] sm:$0xff pattern:$0x75316420]
        %v564 = vld.sshfl [vmem:[#allocation1 + $0x28] sm:$0xff pattern:$0x75316420]
        %565 = vst [vmem:[%s552] ss:$2 sm:$0xff] %v532
        %v566 = vld.sshfl [vmem:[#allocation1 + $0x30] sm:$0xff pattern:$0x75316420]
        %v567 = vld.sshfl [vmem:[#allocation1 + $0x38] sm:$0xff pattern:$0x75316420]
        %v584 = vsel %vm469, %v542, 0.0
        %v585 = vsel %vm469, %v543, 0.0
        %v586 = vadd.f32 %v584, %v585
        %587 = vadd.xlane.f32.xlu0 %v586
        %v588 = vpop.xlane.xlu0 %587
        %v589 = vsel %vm469, %v546, 0.0
        %v590 = vsel %vm469, %v547, 0.0
        %v591 = vadd.f32 %v589, %v590
        %592 = vadd.xlane.f32.xlu0 %v591
        %v593 = vpop.xlane.xlu0 %592
        %v594 = vsel %vm469, %v550, 0.0
        %v595 = vsel %vm469, %v551, 0.0
        %v596 = vadd.f32 %v594, %v595
        %597 = vadd.xlane.f32.xlu0 %v596
        %v598 = vpop.xlane.xlu0 %597
        %v599 = vsel %vm469, %v554, 0.0
        %v600 = vsel %vm469, %v555, 0.0
        %v601 = vadd.f32 %v599, %v600
        %602 = vadd.xlane.f32.xlu0 %v601
        %v603 = vpop.xlane.xlu0 %602
        %v604 = vsel %vm469, %v557, 0.0
        %v605 = vsel %vm469, %v558, 0.0
        %v606 = vadd.f32 %v604, %v605
        %607 = vadd.xlane.f32.xlu0 %v606
        %v608 = vpop.xlane.xlu0 %607
        %v609 = vsel %vm469, %v560, 0.0
        %v610 = vsel %vm469, %v561, 0.0
        %v611 = vadd.f32 %v609, %v610
        %612 = vadd.xlane.f32.xlu0 %v611
        %v613 = vpop.xlane.xlu0 %612
        %v614 = vsel %vm469, %v563, 0.0
        %v615 = vsel %vm469, %v564, 0.0
        %v616 = vadd.f32 %v614, %v615
        %617 = vadd.xlane.f32.xlu0 %v616
        %v618 = vpop.xlane.xlu0 %617
        %v619 = vsel %vm469, %v566, 0.0
        %v620 = vsel %vm469, %v567, 0.0
        %v621 = vadd.f32 %v619, %v620
        %622 = vadd.xlane.f32.xlu0 %v621
        %v623 = vpop.xlane.xlu0 %622
        %v624 = vmul.f32 %v588, %v516
        %v625 = vmul.f32 %v593, %v516
        %v626 = vmul.f32 %v598, %v516
        %v627 = vmul.f32 %v603, %v516
        %v628 = vmul.f32 %v608, %v516
        %v629 = vmul.f32 %v613, %v516
        %v630 = vmul.f32 %v618, %v516
        %v631 = vmul.f32 %v623, %v516
        %v640 = vlaneseq
        %v641 = vand.u32 %v640, 127
        %v642 = vperm.slane %v517, %v641
        %v643 = vperm.slane %v518, %v641
        %v644 = vperm.slane %v519, %v641
        %v645 = vperm.slane %v520, %v641
        %v646 = vperm.slane %v521, %v641
        %v647 = vperm.slane %v522, %v641
        %v648 = vperm.slane %v523, %v641
        %v649 = vperm.slane %v524, %v641
        %vm650 = vcmask 1041409
        %v651 = vsel %vm650, %v643, %v642
        %vm652 = vcmask 1042434
        %v653 = vsel %vm652, %v644, %v651
        %vm654 = vcmask 1043459
        %v655 = vsel %vm654, %v645, %v653
        %vm656 = vcmask 1044484
        %v657 = vsel %vm656, %v646, %v655
        %vm658 = vcmask 1045509
        %v659 = vsel %vm658, %v647, %v657
        %vm660 = vcmask 1046534
        %v661 = vsel %vm660, %v648, %v659
        %vm662 = vcmask 1047559
        %v663 = vsel %vm662, %v649, %v661
        %v673 = vperm.slane %v624, %v641
        %v674 = vperm.slane %v625, %v641
        %v675 = vperm.slane %v626, %v641
        %v676 = vperm.slane %v627, %v641
        %v677 = vperm.slane %v628, %v641
        %v678 = vperm.slane %v629, %v641
        %v679 = vperm.slane %v630, %v641
        %v680 = vperm.slane %v631, %v641
        %v681 = vsel %vm650, %v674, %v673
        %v682 = vsel %vm652, %v675, %v681
        %v683 = vsel %vm654, %v676, %v682
        %v684 = vsel %vm656, %v677, %v683
        %v685 = vsel %vm658, %v678, %v684
        %v686 = vsel %vm660, %v679, %v685
        %v687 = vsel %vm662, %v680, %v686
        %v689 = vpack.c.bf16 %v687, %v663
        %v690 = vld [vmem:[#allocation12] sm:$0x3]
        %vm691 = vcmask 31744
        %v693 = vsel %vm691, %v689, 0
        %vm695 = vcmask 1041408
        %v697 = vsel %vm695, %v690, 0
        %699 = vmatpush.bf16.msra.mxu0 0
        %700 = vmatpush.bf16.msra.mxu0 0
        %701 = vmatpush.bf16.msra.mxu0 0
        %702 = vmatpush.bf16.msra.mxu0 0
        %703 = vmatpush.bf16.msra.mxu0 0
        %704 = vmatpush.bf16.msra.mxu0 0
        %705 = vmatpush.bf16.msra.mxu0 0
        %706 = vmatpush.bf16.msra.mxu0 %v697
        %707 = vmatmul.bf16.gmra.mxu0 %v693
        %v708 = vpop.f32.mrf.mxu0
        %v709 = vadd.f32 0.0, %v708
        %v710 = vpop.f32.mrf.mxu0
        %v711 = vadd.f32 0.0, %v710
        %712 = vdwg.mxu0
        %v713 = vmax.f32 %v709, 0.0
        %v714 = vmax.f32 %v711, 0.0
        %v715 = vpack.c.bf16 %v714, %v713
        %v716 = vld [vmem:[#allocation13] sm:$0xf]
        %v717 = vld [vmem:[#allocation13 + $0x4] sm:$0xf]
        %v718 = vld [vmem:[#allocation13 + $0x8] sm:$0xf]
        %v719 = vld [vmem:[#allocation13 + $0xc] sm:$0xf]
        %v720 = vld [vmem:[#allocation13 + $0x10] sm:$0xf]
        %v721 = vld [vmem:[#allocation13 + $0x14] sm:$0xf]
        %v722 = vld [vmem:[#allocation13 + $0x18] sm:$0xf]
        %v723 = vld [vmem:[#allocation13 + $0x1c] sm:$0xf]
        %v724 = vld [vmem:[#allocation13 + $0x20] sm:$0xf]
        %v725 = vld [vmem:[#allocation13 + $0x24] sm:$0xf]
        %v726 = vld [vmem:[#allocation13 + $0x28] sm:$0xf]
        %v727 = vld [vmem:[#allocation13 + $0x2c] sm:$0xf]
        %v728 = vld [vmem:[#allocation13 + $0x30] sm:$0xf]
        %v729 = vld [vmem:[#allocation13 + $0x34] sm:$0xf]
        %v730 = vld [vmem:[#allocation13 + $0x38] sm:$0xf]
        %v731 = vld [vmem:[#allocation13 + $0x3c] sm:$0xf]
        %v748 = vunpack.c.l.b16 %v716
        %v749 = vunpack.c.l.b16 %v717
        %v750 = vunpack.c.l.b16 %v718
        %v751 = vunpack.c.l.b16 %v719
        %v752 = vunpack.c.l.b16 %v720
        %v753 = vunpack.c.l.b16 %v721
        %v754 = vunpack.c.l.b16 %v722
        %v755 = vunpack.c.l.b16 %v723
        %v756 = vunpack.c.l.b16 %v724
        %v757 = vunpack.c.l.b16 %v725
        %v758 = vunpack.c.l.b16 %v726
        %v759 = vunpack.c.l.b16 %v727
        %v760 = vunpack.c.l.b16 %v728
        %v761 = vunpack.c.l.b16 %v729
        %v762 = vunpack.c.l.b16 %v730
        %v763 = vunpack.c.l.b16 %v731
        %v764 = vpack.c.b16 %v749, %v748
        %v765 = vpack.c.b16 %v751, %v750
        %v766 = vpack.c.b16 %v753, %v752
        %v767 = vpack.c.b16 %v755, %v754
        %v768 = vpack.c.b16 %v757, %v756
        %v769 = vpack.c.b16 %v759, %v758
        %v770 = vpack.c.b16 %v761, %v760
        %v771 = vpack.c.b16 %v763, %v762
        %780 = vmatpush.bf16.msra.mxu0 %v771
        %781 = vmatpush.bf16.msra.mxu0 %v770
        %782 = vmatpush.bf16.msra.mxu0 %v769
        %783 = vmatpush.bf16.msra.mxu0 %v768
        %784 = vmatpush.bf16.msra.mxu0 %v767
        %785 = vmatpush.bf16.msra.mxu0 %v766
        %786 = vmatpush.bf16.msra.mxu0 %v765
        %787 = vmatpush.bf16.msra.mxu0 %v764
        %788 = vmatmul.bf16.gmra.mxu0 %v715
        %v789 = vpop.f32.mrf.mxu0
        %v790 = vadd.f32 0.0, %v789
        %v791 = vpop.f32.mrf.mxu0
        %v792 = vadd.f32 0.0, %v791
        %793 = vdwg.mxu0
        %v794 = vmax.f32 %v790, 0.0
        %v795 = vmax.f32 %v792, 0.0
        %v796 = vpack.c.bf16 %v795, %v794
        %v797 = vld [vmem:[#allocation15] sm:$0xf]
        %v798 = vld [vmem:[#allocation15 + $0x4] sm:$0xf]
        %v799 = vld [vmem:[#allocation15 + $0x8] sm:$0xf]
        %v800 = vld [vmem:[#allocation15 + $0xc] sm:$0xf]
        %v801 = vld [vmem:[#allocation15 + $0x10] sm:$0xf]
        %v802 = vld [vmem:[#allocation15 + $0x14] sm:$0xf]
        %v803 = vld [vmem:[#allocation15 + $0x18] sm:$0xf]
        %v804 = vld [vmem:[#allocation15 + $0x1c] sm:$0xf]
        %v805 = vld [vmem:[#allocation15 + $0x20] sm:$0xf]
        %v806 = vld [vmem:[#allocation15 + $0x24] sm:$0xf]
        %v807 = vld [vmem:[#allocation15 + $0x28] sm:$0xf]
        %v808 = vld [vmem:[#allocation15 + $0x2c] sm:$0xf]
        %v809 = vld [vmem:[#allocation15 + $0x30] sm:$0xf]
        %v810 = vld [vmem:[#allocation15 + $0x34] sm:$0xf]
        %v811 = vld [vmem:[#allocation15 + $0x38] sm:$0xf]
        %v812 = vld [vmem:[#allocation15 + $0x3c] sm:$0xf]
        %v829 = vunpack.c.l.b16 %v797
        %v830 = vunpack.c.l.b16 %v798
        %v831 = vunpack.c.l.b16 %v799
        %v832 = vunpack.c.l.b16 %v800
        %v833 = vunpack.c.l.b16 %v801
        %v834 = vunpack.c.l.b16 %v802
        %v835 = vunpack.c.l.b16 %v803
        %v836 = vunpack.c.l.b16 %v804
        %v837 = vunpack.c.l.b16 %v805
        %v838 = vunpack.c.l.b16 %v806
        %v839 = vunpack.c.l.b16 %v807
        %v840 = vunpack.c.l.b16 %v808
        %v841 = vunpack.c.l.b16 %v809
        %v842 = vunpack.c.l.b16 %v810
        %v843 = vunpack.c.l.b16 %v811
        %v844 = vunpack.c.l.b16 %v812
        %v845 = vpack.c.b16 %v830, %v829
        %v846 = vpack.c.b16 %v832, %v831
        %v847 = vpack.c.b16 %v834, %v833
        %v848 = vpack.c.b16 %v836, %v835
        %v849 = vpack.c.b16 %v838, %v837
        %v850 = vpack.c.b16 %v840, %v839
        %v851 = vpack.c.b16 %v842, %v841
        %v852 = vpack.c.b16 %v844, %v843
        %861 = vmatpush.bf16.msra.mxu0 %v852
        %862 = vmatpush.bf16.msra.mxu0 %v851
        %863 = vmatpush.bf16.msra.mxu0 %v850
        %864 = vmatpush.bf16.msra.mxu0 %v849
        %865 = vmatpush.bf16.msra.mxu0 %v848
        %866 = vmatpush.bf16.msra.mxu0 %v847
        %867 = vmatpush.bf16.msra.mxu0 %v846
        %868 = vmatpush.bf16.msra.mxu0 %v845
        %869 = vmatmul.bf16.gmra.mxu0 %v796
        %v870 = vpop.f32.mrf.mxu0
        %v871 = vadd.f32 0.0, %v870
        %v872 = vpop.f32.mrf.mxu0
        %v873 = vadd.f32 0.0, %v872
        %874 = vdwg.mxu0
        %v875 = vmax.f32 %v871, 0.0
        %v876 = vmax.f32 %v873, 0.0
        %v877 = vpack.c.bf16 %v876, %v875
        %v878 = vld [vmem:[#allocation16] sm:$0xf]
        %v879 = vld [vmem:[#allocation16 + $0x4] sm:$0xf]
        %v880 = vld [vmem:[#allocation16 + $0x8] sm:$0xf]
        %v881 = vld [vmem:[#allocation16 + $0xc] sm:$0xf]
        %v882 = vld [vmem:[#allocation16 + $0x10] sm:$0xf]
        %v883 = vld [vmem:[#allocation16 + $0x14] sm:$0xf]
        %v884 = vld [vmem:[#allocation16 + $0x18] sm:$0xf]
        %v885 = vld [vmem:[#allocation16 + $0x1c] sm:$0xf]
        %v886 = vld [vmem:[#allocation16 + $0x20] sm:$0xf]
        %v887 = vld [vmem:[#allocation16 + $0x24] sm:$0xf]
        %v888 = vld [vmem:[#allocation16 + $0x28] sm:$0xf]
        %v889 = vld [vmem:[#allocation16 + $0x2c] sm:$0xf]
        %v890 = vld [vmem:[#allocation16 + $0x30] sm:$0xf]
        %v891 = vld [vmem:[#allocation16 + $0x34] sm:$0xf]
        %v892 = vld [vmem:[#allocation16 + $0x38] sm:$0xf]
        %v893 = vld [vmem:[#allocation16 + $0x3c] sm:$0xf]
        %v910 = vunpack.c.l.b16 %v878
        %v911 = vunpack.c.l.b16 %v879
        %v912 = vunpack.c.l.b16 %v880
        %v913 = vunpack.c.l.b16 %v881
        %v914 = vunpack.c.l.b16 %v882
        %v915 = vunpack.c.l.b16 %v883
        %v916 = vunpack.c.l.b16 %v884
        %v917 = vunpack.c.l.b16 %v885
        %v918 = vunpack.c.l.b16 %v886
        %v919 = vunpack.c.l.b16 %v887
        %v920 = vunpack.c.l.b16 %v888
        %v921 = vunpack.c.l.b16 %v889
        %v922 = vunpack.c.l.b16 %v890
        %v923 = vunpack.c.l.b16 %v891
        %v924 = vunpack.c.l.b16 %v892
        %v925 = vunpack.c.l.b16 %v893
        %v926 = vpack.c.b16 %v911, %v910
        %v927 = vpack.c.b16 %v913, %v912
        %v928 = vpack.c.b16 %v915, %v914
        %v929 = vpack.c.b16 %v917, %v916
        %v930 = vpack.c.b16 %v919, %v918
        %v931 = vpack.c.b16 %v921, %v920
        %v932 = vpack.c.b16 %v923, %v922
        %v933 = vpack.c.b16 %v925, %v924
        %942 = vmatpush.bf16.msra.mxu0 %v933
        %943 = vmatpush.bf16.msra.mxu0 %v932
        %944 = vmatpush.bf16.msra.mxu0 %v931
        %945 = vmatpush.bf16.msra.mxu0 %v930
        %946 = vmatpush.bf16.msra.mxu0 %v929
        %947 = vmatpush.bf16.msra.mxu0 %v928
        %948 = vmatpush.bf16.msra.mxu0 %v927
        %949 = vmatpush.bf16.msra.mxu0 %v926
        %950 = vmatmul.bf16.gmra.mxu0 %v877
        %v951 = vpop.f32.mrf.mxu0
        %v952 = vadd.f32 0.0, %v951
        %v953 = vpop.f32.mrf.mxu0
        %v954 = vadd.f32 0.0, %v953
        %955 = vdwg.mxu0
        %v956 = vld [vmem:[#allocation2] sm:$0x3]
        %v957 = vrot.slane %v952, 4
        %v958 = vadd.f32 %v952, %v957
        %v959 = vrot.slane %v958, 2
        %v960 = vadd.f32 %v958, %v959
        %v961 = vrot.slane %v960, 1
        %v962 = vadd.f32 %v960, %v961
        %v963 = vrot.slane %v954, 4
        %v964 = vadd.f32 %v954, %v963
        %v965 = vrot.slane %v964, 2
        %v966 = vadd.f32 %v964, %v965
        %v967 = vrot.slane %v966, 1
        %v968 = vadd.f32 %v966, %v967
        %vm969 = vcmask 1040384
        %v970 = vsel %vm969, %v962, %v968
        %v971 = vadd.f32 %v956, %v970
        %972 = vst [vmem:[#allocation2] sm:$0x3] %v971
        %v973 = vld [vmem:[#allocation3] sm:$0x3]
        %v974 = vmul.f32 %v952, %v952
        %v975 = vrot.slane %v974, 4
        %v976 = vadd.f32 %v974, %v975
        %v977 = vrot.slane %v976, 2
        %v978 = vadd.f32 %v976, %v977
        %v979 = vrot.slane %v978, 1
        %v980 = vadd.f32 %v978, %v979
        %v981 = vmul.f32 %v954, %v954
        %v982 = vrot.slane %v981, 4
        %v983 = vadd.f32 %v981, %v982
        %v984 = vrot.slane %v983, 2
        %v985 = vadd.f32 %v983, %v984
        %v986 = vrot.slane %v985, 1
        %v987 = vadd.f32 %v985, %v986
        %v988 = vsel %vm969, %v980, %v987
        %v989 = vadd.f32 %v973, %v988
        %990 = vst [vmem:[#allocation3] sm:$0x3] %v989
        %v991 = vld [vmem:[#allocation4] sm:$0xff]
        %v992 = vld [vmem:[#allocation4 + $0x8] sm:$0xff]
        %v993 = vld [vmem:[#allocation4 + $0x10] sm:$0xff]
        %v994 = vld [vmem:[#allocation4 + $0x18] sm:$0xff]
        %v995 = vld [vmem:[#allocation4 + $0x20] sm:$0xff]
        %v996 = vld [vmem:[#allocation4 + $0x28] sm:$0xff]
        %v997 = vld [vmem:[#allocation4 + $0x30] sm:$0xff]
        %v998 = vld [vmem:[#allocation4 + $0x38] sm:$0xff]
        %v999 = vld [vmem:[#allocation4 + $0x40] sm:$0xff]
        %v1000 = vld [vmem:[#allocation4 + $0x48] sm:$0xff]
        %v1001 = vld [vmem:[#allocation4 + $0x50] sm:$0xff]
        %v1002 = vld [vmem:[#allocation4 + $0x58] sm:$0xff]
        %v1003 = vld [vmem:[#allocation4 + $0x60] sm:$0xff]
        %v1004 = vld [vmem:[#allocation4 + $0x68] sm:$0xff]
        %v1005 = vld [vmem:[#allocation4 + $0x70] sm:$0xff]
        %v1006 = vld [vmem:[#allocation4 + $0x78] sm:$0xff]
        %1007 = vxpose.xlu0.b32.start [1/16] %v952, 128
        %1008 = vxpose.xlu0.b32.cont [2/16] 0.0, 128
        %1009 = vxpose.xlu0.b32.cont [3/16] 0.0, 128
        %1010 = vxpose.xlu0.b32.cont [4/16] 0.0, 128
        %1011 = vxpose.xlu0.b32.cont [5/16] 0.0, 128
        %1012 = vxpose.xlu0.b32.cont [6/16] 0.0, 128
        %1013 = vxpose.xlu0.b32.cont [7/16] 0.0, 128
        %1014 = vxpose.xlu0.b32.cont [8/16] 0.0, 128
        %1015 = vxpose.xlu0.b32.cont [9/16] 0.0, 128
        %1016 = vxpose.xlu0.b32.cont [10/16] 0.0, 128
        %1017 = vxpose.xlu0.b32.cont [11/16] 0.0, 128
        %1018 = vxpose.xlu0.b32.cont [12/16] 0.0, 128
        %1019 = vxpose.xlu0.b32.cont [13/16] 0.0, 128
        %1020 = vxpose.xlu0.b32.cont [14/16] 0.0, 128
        %1021 = vxpose.xlu0.b32.cont [15/16] 0.0, 128
        %1022 = vxpose.xlu0.b32.end [16/16] 0.0, 128
        %v1023 = vpop.trf.xlu0
        %v1024 = vpop.trf.xlu0
        %v1025 = vpop.trf.xlu0
        %v1026 = vpop.trf.xlu0
        %v1027 = vpop.trf.xlu0
        %v1028 = vpop.trf.xlu0
        %v1029 = vpop.trf.xlu0
        %v1030 = vpop.trf.xlu0
        %v1031 = vpop.trf.xlu0
        %v1032 = vpop.trf.xlu0
        %v1033 = vpop.trf.xlu0
        %v1034 = vpop.trf.xlu0
        %v1035 = vpop.trf.xlu0
        %v1036 = vpop.trf.xlu0
        %v1037 = vpop.trf.xlu0
        %v1038 = vpop.trf.xlu0
        %vm1039 = vcmask 64512
        %v1041 = vsel %vm1039, %v1023, 0
        %v1044 = vsel %vm1039, %v1024, 0
        %v1047 = vsel %vm1039, %v1025, 0
        %v1050 = vsel %vm1039, %v1026, 0
        %v1053 = vsel %vm1039, %v1027, 0
        %v1056 = vsel %vm1039, %v1028, 0
        %v1059 = vsel %vm1039, %v1029, 0
        %v1062 = vsel %vm1039, %v1030, 0
        %v1065 = vsel %vm1039, %v1031, 0
        %v1068 = vsel %vm1039, %v1032, 0
        %v1071 = vsel %vm1039, %v1033, 0
        %v1074 = vsel %vm1039, %v1034, 0
        %v1077 = vsel %vm1039, %v1035, 0
        %v1080 = vsel %vm1039, %v1036, 0
        %v1083 = vsel %vm1039, %v1037, 0
        %v1086 = vsel %vm1039, %v1038, 0
        %1088 = vmatpush.msra.mxu0 0.0
        %1089 = vmatpush.msra.mxu0 0.0
        %1090 = vmatpush.msra.mxu0 0.0
        %1091 = vmatpush.msra.mxu0 0.0
        %1092 = vmatpush.msra.mxu0 0.0
        %1093 = vmatpush.msra.mxu0 0.0
        %1094 = vmatpush.msra.mxu0 0.0
        %1095 = vmatpush.msra.mxu0 0.0
        %1096 = vmatpush.msra.mxu0 0.0
        %1097 = vmatpush.msra.mxu0 0.0
        %1098 = vmatpush.msra.mxu0 0.0
        %1099 = vmatpush.msra.mxu0 0.0
        %1100 = vmatpush.msra.mxu0 0.0
        %1101 = vmatpush.msra.mxu0 0.0
        %1102 = vmatpush.msra.mxu0 0.0
        %1103 = vmatpush.msra.mxu0 %v952
        %1104 = vmatmul.f32.gmra.mxu0 %v1041
        %v1105 = vpop.f32.mrf.mxu0
        %v1106 = vadd.f32 0.0, %v1105
        %1107 = vmatmul.f32.gmra.mxu0 %v1044
        %v1108 = vpop.f32.mrf.mxu0
        %v1109 = vadd.f32 0.0, %v1108
        %1110 = vmatmul.f32.gmra.mxu0 %v1047
        %v1111 = vpop.f32.mrf.mxu0
        %v1112 = vadd.f32 0.0, %v1111
        %1113 = vmatmul.f32.gmra.mxu0 %v1050
        %v1114 = vpop.f32.mrf.mxu0
        %v1115 = vadd.f32 0.0, %v1114
        %1116 = vmatmul.f32.gmra.mxu0 %v1053
        %v1117 = vpop.f32.mrf.mxu0
        %v1118 = vadd.f32 0.0, %v1117
        %1119 = vmatmul.f32.gmra.mxu0 %v1056
        %v1120 = vpop.f32.mrf.mxu0
        %v1121 = vadd.f32 0.0, %v1120
        %1122 = vmatmul.f32.gmra.mxu0 %v1059
        %v1123 = vpop.f32.mrf.mxu0
        %v1124 = vadd.f32 0.0, %v1123
        %1125 = vmatmul.f32.gmra.mxu0 %v1062
        %v1126 = vpop.f32.mrf.mxu0
        %v1127 = vadd.f32 0.0, %v1126
        %1128 = vmatmul.f32.gmra.mxu0 %v1065
        %v1129 = vpop.f32.mrf.mxu0
        %v1130 = vadd.f32 0.0, %v1129
        %1131 = vmatmul.f32.gmra.mxu0 %v1068
        %v1132 = vpop.f32.mrf.mxu0
        %v1133 = vadd.f32 0.0, %v1132
        %1134 = vmatmul.f32.gmra.mxu0 %v1071
        %v1135 = vpop.f32.mrf.mxu0
        %v1136 = vadd.f32 0.0, %v1135
        %1137 = vmatmul.f32.gmra.mxu0 %v1074
        %v1138 = vpop.f32.mrf.mxu0
        %v1139 = vadd.f32 0.0, %v1138
        %1140 = vmatmul.f32.gmra.mxu0 %v1077
        %v1141 = vpop.f32.mrf.mxu0
        %v1142 = vadd.f32 0.0, %v1141
        %1143 = vmatmul.f32.gmra.mxu0 %v1080
        %v1144 = vpop.f32.mrf.mxu0
        %v1145 = vadd.f32 0.0, %v1144
        %1146 = vmatmul.f32.gmra.mxu0 %v1083
        %v1147 = vpop.f32.mrf.mxu0
        %v1148 = vadd.f32 0.0, %v1147
        %1149 = vmatmul.f32.gmra.mxu0 %v1086
        %v1150 = vpop.f32.mrf.mxu0
        %v1151 = vadd.f32 0.0, %v1150
        %1152 = vdwg.mxu0
        %v1153 = vadd.f32 %v991, %v1106
        %v1154 = vadd.f32 %v992, %v1109
        %v1155 = vadd.f32 %v993, %v1112
        %v1156 = vadd.f32 %v994, %v1115
        %v1157 = vadd.f32 %v995, %v1118
        %v1158 = vadd.f32 %v996, %v1121
        %v1159 = vadd.f32 %v997, %v1124
        %v1160 = vadd.f32 %v998, %v1127
        %v1161 = vadd.f32 %v999, %v1130
        %v1162 = vadd.f32 %v1000, %v1133
        %v1163 = vadd.f32 %v1001, %v1136
        %v1164 = vadd.f32 %v1002, %v1139
        %v1165 = vadd.f32 %v1003, %v1142
        %v1166 = vadd.f32 %v1004, %v1145
        %v1167 = vadd.f32 %v1005, %v1148
        %v1168 = vadd.f32 %v1006, %v1151
        %1169 = vst [vmem:[#allocation4] sm:$0xff] %v1153
        %1170 = vst [vmem:[#allocation4 + $0x8] sm:$0xff] %v1154
        %1171 = vst [vmem:[#allocation4 + $0x10] sm:$0xff] %v1155
        %1172 = vst [vmem:[#allocation4 + $0x18] sm:$0xff] %v1156
        %1173 = vst [vmem:[#allocation4 + $0x20] sm:$0xff] %v1157
        %1174 = vst [vmem:[#allocation4 + $0x28] sm:$0xff] %v1158
        %1175 = vst [vmem:[#allocation4 + $0x30] sm:$0xff] %v1159
        %1176 = vst [vmem:[#allocation4 + $0x38] sm:$0xff] %v1160
        %1177 = vst [vmem:[#allocation4 + $0x40] sm:$0xff] %v1161
        %1178 = vst [vmem:[#allocation4 + $0x48] sm:$0xff] %v1162
        %1179 = vst [vmem:[#allocation4 + $0x50] sm:$0xff] %v1163
        %1180 = vst [vmem:[#allocation4 + $0x58] sm:$0xff] %v1164
        %1181 = vst [vmem:[#allocation4 + $0x60] sm:$0xff] %v1165
        %1182 = vst [vmem:[#allocation4 + $0x68] sm:$0xff] %v1166
        %1183 = vst [vmem:[#allocation4 + $0x70] sm:$0xff] %v1167
        %1184 = vst [vmem:[#allocation4 + $0x78] sm:$0xff] %v1168
        %v1185 = vld [vmem:[#allocation5] sm:$0xff]
        %v1186 = vld [vmem:[#allocation5 + $0x8] sm:$0xff]
        %v1187 = vld [vmem:[#allocation5 + $0x10] sm:$0xff]
        %v1188 = vld [vmem:[#allocation5 + $0x18] sm:$0xff]
        %v1189 = vld [vmem:[#allocation5 + $0x20] sm:$0xff]
        %v1190 = vld [vmem:[#allocation5 + $0x28] sm:$0xff]
        %v1191 = vld [vmem:[#allocation5 + $0x30] sm:$0xff]
        %v1192 = vld [vmem:[#allocation5 + $0x38] sm:$0xff]
        %v1193 = vld [vmem:[#allocation5 + $0x40] sm:$0xff]
        %v1194 = vld [vmem:[#allocation5 + $0x48] sm:$0xff]
        %v1195 = vld [vmem:[#allocation5 + $0x50] sm:$0xff]
        %v1196 = vld [vmem:[#allocation5 + $0x58] sm:$0xff]
        %v1197 = vld [vmem:[#allocation5 + $0x60] sm:$0xff]
        %v1198 = vld [vmem:[#allocation5 + $0x68] sm:$0xff]
        %v1199 = vld [vmem:[#allocation5 + $0x70] sm:$0xff]
        %v1200 = vld [vmem:[#allocation5 + $0x78] sm:$0xff]
        %1201 = vxpose.xlu0.b32.start [1/16] %v954, 128
        %1202 = vxpose.xlu0.b32.cont [2/16] 0.0, 128
        %1203 = vxpose.xlu0.b32.cont [3/16] 0.0, 128
        %1204 = vxpose.xlu0.b32.cont [4/16] 0.0, 128
        %1205 = vxpose.xlu0.b32.cont [5/16] 0.0, 128
        %1206 = vxpose.xlu0.b32.cont [6/16] 0.0, 128
        %1207 = vxpose.xlu0.b32.cont [7/16] 0.0, 128
        %1208 = vxpose.xlu0.b32.cont [8/16] 0.0, 128
        %1209 = vxpose.xlu0.b32.cont [9/16] 0.0, 128
        %1210 = vxpose.xlu0.b32.cont [10/16] 0.0, 128
        %1211 = vxpose.xlu0.b32.cont [11/16] 0.0, 128
        %1212 = vxpose.xlu0.b32.cont [12/16] 0.0, 128
        %1213 = vxpose.xlu0.b32.cont [13/16] 0.0, 128
        %1214 = vxpose.xlu0.b32.cont [14/16] 0.0, 128
        %1215 = vxpose.xlu0.b32.cont [15/16] 0.0, 128
        %1216 = vxpose.xlu0.b32.end [16/16] 0.0, 128
        %v1217 = vpop.trf.xlu0
        %v1218 = vpop.trf.xlu0
        %v1219 = vpop.trf.xlu0
        %v1220 = vpop.trf.xlu0
        %v1221 = vpop.trf.xlu0
        %v1222 = vpop.trf.xlu0
        %v1223 = vpop.trf.xlu0
        %v1224 = vpop.trf.xlu0
        %v1225 = vpop.trf.xlu0
        %v1226 = vpop.trf.xlu0
        %v1227 = vpop.trf.xlu0
        %v1228 = vpop.trf.xlu0
        %v1229 = vpop.trf.xlu0
        %v1230 = vpop.trf.xlu0
        %v1231 = vpop.trf.xlu0
        %v1232 = vpop.trf.xlu0
        %v1234 = vsel %vm1039, %v1217, 0
        %v1237 = vsel %vm1039, %v1218, 0
        %v1240 = vsel %vm1039, %v1219, 0
        %v1243 = vsel %vm1039, %v1220, 0
        %v1246 = vsel %vm1039, %v1221, 0
        %v1249 = vsel %vm1039, %v1222, 0
        %v1252 = vsel %vm1039, %v1223, 0
        %v1255 = vsel %vm1039, %v1224, 0
        %v1258 = vsel %vm1039, %v1225, 0
        %v1261 = vsel %vm1039, %v1226, 0
        %v1264 = vsel %vm1039, %v1227, 0
        %v1267 = vsel %vm1039, %v1228, 0
        %v1270 = vsel %vm1039, %v1229, 0
        %v1273 = vsel %vm1039, %v1230, 0
        %v1276 = vsel %vm1039, %v1231, 0
        %v1279 = vsel %vm1039, %v1232, 0
        %1281 = vmatpush.msra.mxu0 0.0
        %1282 = vmatpush.msra.mxu0 0.0
        %1283 = vmatpush.msra.mxu0 0.0
        %1284 = vmatpush.msra.mxu0 0.0
        %1285 = vmatpush.msra.mxu0 0.0
        %1286 = vmatpush.msra.mxu0 0.0
        %1287 = vmatpush.msra.mxu0 0.0
        %1288 = vmatpush.msra.mxu0 0.0
        %1289 = vmatpush.msra.mxu0 0.0
        %1290 = vmatpush.msra.mxu0 0.0
        %1291 = vmatpush.msra.mxu0 0.0
        %1292 = vmatpush.msra.mxu0 0.0
        %1293 = vmatpush.msra.mxu0 0.0
        %1294 = vmatpush.msra.mxu0 0.0
        %1295 = vmatpush.msra.mxu0 0.0
        %1296 = vmatpush.msra.mxu0 %v954
        %1297 = vmatmul.f32.gmra.mxu0 %v1234
        %v1298 = vpop.f32.mrf.mxu0
        %v1299 = vadd.f32 0.0, %v1298
        %1300 = vmatmul.f32.gmra.mxu0 %v1237
        %v1301 = vpop.f32.mrf.mxu0
        %v1302 = vadd.f32 0.0, %v1301
        %1303 = vmatmul.f32.gmra.mxu0 %v1240
        %v1304 = vpop.f32.mrf.mxu0
        %v1305 = vadd.f32 0.0, %v1304
        %1306 = vmatmul.f32.gmra.mxu0 %v1243
        %v1307 = vpop.f32.mrf.mxu0
        %v1308 = vadd.f32 0.0, %v1307
        %1309 = vmatmul.f32.gmra.mxu0 %v1246
        %v1310 = vpop.f32.mrf.mxu0
        %v1311 = vadd.f32 0.0, %v1310
        %1312 = vmatmul.f32.gmra.mxu0 %v1249
        %v1313 = vpop.f32.mrf.mxu0
        %v1314 = vadd.f32 0.0, %v1313
        %1315 = vmatmul.f32.gmra.mxu0 %v1252
        %v1316 = vpop.f32.mrf.mxu0
        %v1317 = vadd.f32 0.0, %v1316
        %1318 = vmatmul.f32.gmra.mxu0 %v1255
        %v1319 = vpop.f32.mrf.mxu0
        %v1320 = vadd.f32 0.0, %v1319
        %1321 = vmatmul.f32.gmra.mxu0 %v1258
        %v1322 = vpop.f32.mrf.mxu0
        %v1323 = vadd.f32 0.0, %v1322
        %1324 = vmatmul.f32.gmra.mxu0 %v1261
        %v1325 = vpop.f32.mrf.mxu0
        %v1326 = vadd.f32 0.0, %v1325
        %1327 = vmatmul.f32.gmra.mxu0 %v1264
        %v1328 = vpop.f32.mrf.mxu0
        %v1329 = vadd.f32 0.0, %v1328
        %1330 = vmatmul.f32.gmra.mxu0 %v1267
        %v1331 = vpop.f32.mrf.mxu0
        %v1332 = vadd.f32 0.0, %v1331
        %1333 = vmatmul.f32.gmra.mxu0 %v1270
        %v1334 = vpop.f32.mrf.mxu0
        %v1335 = vadd.f32 0.0, %v1334
        %1336 = vmatmul.f32.gmra.mxu0 %v1273
        %v1337 = vpop.f32.mrf.mxu0
        %v1338 = vadd.f32 0.0, %v1337
        %1339 = vmatmul.f32.gmra.mxu0 %v1276
        %v1340 = vpop.f32.mrf.mxu0
        %v1341 = vadd.f32 0.0, %v1340
        %1342 = vmatmul.f32.gmra.mxu0 %v1279
        %v1343 = vpop.f32.mrf.mxu0
        %v1344 = vadd.f32 0.0, %v1343
        %1345 = vdwg.mxu0
        %v1346 = vadd.f32 %v1185, %v1299
        %v1347 = vadd.f32 %v1186, %v1302
        %v1348 = vadd.f32 %v1187, %v1305
        %v1349 = vadd.f32 %v1188, %v1308
        %v1350 = vadd.f32 %v1189, %v1311
        %v1351 = vadd.f32 %v1190, %v1314
        %v1352 = vadd.f32 %v1191, %v1317
        %v1353 = vadd.f32 %v1192, %v1320
        %v1354 = vadd.f32 %v1193, %v1323
        %v1355 = vadd.f32 %v1194, %v1326
        %v1356 = vadd.f32 %v1195, %v1329
        %v1357 = vadd.f32 %v1196, %v1332
        %v1358 = vadd.f32 %v1197, %v1335
        %v1359 = vadd.f32 %v1198, %v1338
        %v1360 = vadd.f32 %v1199, %v1341
        %v1361 = vadd.f32 %v1200, %v1344
        %1362 = vst [vmem:[#allocation5] sm:$0xff] %v1346
        %1363 = vst [vmem:[#allocation5 + $0x8] sm:$0xff] %v1347
        %1364 = vst [vmem:[#allocation5 + $0x10] sm:$0xff] %v1348
        %1365 = vst [vmem:[#allocation5 + $0x18] sm:$0xff] %v1349
        %1366 = vst [vmem:[#allocation5 + $0x20] sm:$0xff] %v1350
        %1367 = vst [vmem:[#allocation5 + $0x28] sm:$0xff] %v1351
        %1368 = vst [vmem:[#allocation5 + $0x30] sm:$0xff] %v1352
        %1369 = vst [vmem:[#allocation5 + $0x38] sm:$0xff] %v1353
        %1370 = vst [vmem:[#allocation5 + $0x40] sm:$0xff] %v1354
        %1371 = vst [vmem:[#allocation5 + $0x48] sm:$0xff] %v1355
        %1372 = vst [vmem:[#allocation5 + $0x50] sm:$0xff] %v1356
        %1373 = vst [vmem:[#allocation5 + $0x58] sm:$0xff] %v1357
        %1374 = vst [vmem:[#allocation5 + $0x60] sm:$0xff] %v1358
        %1375 = vst [vmem:[#allocation5 + $0x68] sm:$0xff] %v1359
        %1376 = vst [vmem:[#allocation5 + $0x70] sm:$0xff] %v1360
        %1377 = vst [vmem:[#allocation5 + $0x78] sm:$0xff] %v1361
        %v1378 = vsub.f32 %v952, %v954
        %v1379 = vld [vmem:[#allocation6] sm:$0x1]
        %v1380 = vmul.f32 %v1378, %v1378
        %v1381 = vrot.slane %v1380, 4
        %v1382 = vadd.f32 %v1380, %v1381
        %v1383 = vrot.slane %v1382, 2
        %v1384 = vadd.f32 %v1382, %v1383
        %v1385 = vrot.slane %v1384, 1
        %v1386 = vadd.f32 %v1384, %v1385
        %v1387 = vadd.f32 %v1379, %v1386
        %1388 = vst [vmem:[#allocation6] sm:$0x1] %v1387
        %p1389 = scmp.eq.s32.totalorder %s26, 1
        // Predicated region
        $region73: #{tpu_custom_call.1} parent=43 // pred_check
          %p1390 = pneg %p1389
        $region74: #{tpu_custom_call.1} parent=43 // pred_check_branch
          %1392 = sbr.rel (%p1390) target = $region76
        $region75: #{tpu_custom_call.1} parent=43 // pred_region
          %v1393 = vld [vmem:[#allocation2] sm:$0x3]
          %v1394 = vrcp.pop 16.0
          %v1395 = vmul.f32 16.0, %v1394
          %v1396 = vsub.f32 1.0, %v1395
          %v1397 = vmul.f32 %v1394, %v1396
          %v1398 = vadd.f32 %v1394, %v1397
          %vm1399 = vweird.f32 %v1394
          %v1400 = vsel %vm1399, %v1394, %v1398
          %v1401 = vmul.f32 %v1393, %v1400
          %v1402 = vld [vmem:[#allocation3] sm:$0x3]
          %v1403 = vmul.f32 %v1401, 16.0
          %v1404 = vmul.f32 %v1403, %v1401
          %v1405 = vsub.f32 %v1402, %v1404
          %v1406 = vrcp.pop 15.0
          %v1407 = vmul.f32 15.0, %v1406
          %v1408 = vsub.f32 1.0, %v1407
          %v1409 = vmul.f32 %v1406, %v1408
          %v1410 = vadd.f32 %v1406, %v1409
          %vm1411 = vweird.f32 %v1406
          %v1412 = vsel %vm1411, %v1406, %v1410
          %v1413 = vmul.f32 %v1405, %v1412
          %v1414 = vadd.f32 %v1413, 0.0001
          %v1415 = vrsqrt.pop %v1414
          %v1416 = vmul.f32 %v1415, %v1414
          %v1417 = vmul.f32 %v1416, %v1415
          %v1418 = vmul.f32 0.5, %v1417
          %v1419 = vsub.f32 1.5, %v1418
          %v1420 = vmul.f32 %v1415, %v1419
          %v1421 = vmul.f32 %v1414, %v1420
          %vm1422 = vcmp.eq.f32.partialorder %v1414, inf
          %v1423 = vsel %vm1422, %v1414, %v1421
          %vm1424 = vcmp.eq.f32.partialorder %v1414, 0.0
          %v1425 = vand.u32 %v1414, 2147483648
          %v1426 = vsel %vm1424, %v1425, %v1423
          %v1427 = vsub.f32 1.0, %v1426
          %v1428 = vmax.f32 %v1427, 0.0
          %v1429 = vsel %vm695, %v1428, 0.0
          %1430 = vadd.xlane.f32.xlu0 %v1429
          %v1431 = vpop.xlane.xlu0 %1430
          %v1432 = vrot.slane %v1431, 4
          %v1433 = vadd.f32 %v1431, %v1432
          %v1434 = vrot.slane %v1433, 2
          %v1435 = vadd.f32 %v1433, %v1434
          %v1436 = vrot.slane %v1435, 1
          %v1437 = vadd.f32 %v1435, %v1436
          %s1438 = vtos %v1437
          %v1439 = vstv %s1438
          %v1440 = vrcp.pop 128.0
          %v1441 = vmul.f32 128.0, %v1440
          %v1442 = vsub.f32 1.0, %v1441
          %v1443 = vmul.f32 %v1440, %v1442
          %v1444 = vadd.f32 %v1440, %v1443
          %vm1445 = vweird.f32 %v1440
          %v1446 = vsel %vm1445, %v1440, %v1444
          %v1447 = vmul.f32 %v1439, %v1446
          %v1448 = vld [vmem:[#allocation4] sm:$0xff]
          %v1449 = vld [vmem:[#allocation4 + $0x8] sm:$0xff]
          %v1450 = vld [vmem:[#allocation4 + $0x10] sm:$0xff]
          %v1451 = vld [vmem:[#allocation4 + $0x18] sm:$0xff]
          %v1452 = vld [vmem:[#allocation4 + $0x20] sm:$0xff]
          %v1453 = vld [vmem:[#allocation4 + $0x28] sm:$0xff]
          %v1454 = vld [vmem:[#allocation4 + $0x30] sm:$0xff]
          %v1455 = vld [vmem:[#allocation4 + $0x38] sm:$0xff]
          %v1456 = vld [vmem:[#allocation4 + $0x40] sm:$0xff]
          %v1457 = vld [vmem:[#allocation4 + $0x48] sm:$0xff]
          %v1458 = vld [vmem:[#allocation4 + $0x50] sm:$0xff]
          %v1459 = vld [vmem:[#allocation4 + $0x58] sm:$0xff]
          %v1460 = vld [vmem:[#allocation4 + $0x60] sm:$0xff]
          %v1461 = vld [vmem:[#allocation4 + $0x68] sm:$0xff]
          %v1462 = vld [vmem:[#allocation4 + $0x70] sm:$0xff]
          %v1463 = vld [vmem:[#allocation4 + $0x78] sm:$0xff]
          %1464 = vxpose.xlu0.b32.start [1/16] %v1401, 128
          %1465 = vxpose.xlu0.b32.cont [2/16] 0.0, 128
          %1466 = vxpose.xlu0.b32.cont [3/16] 0.0, 128
          %1467 = vxpose.xlu0.b32.cont [4/16] 0.0, 128
          %1468 = vxpose.xlu0.b32.cont [5/16] 0.0, 128
          %1469 = vxpose.xlu0.b32.cont [6/16] 0.0, 128
          %1470 = vxpose.xlu0.b32.cont [7/16] 0.0, 128
          %1471 = vxpose.xlu0.b32.cont [8/16] 0.0, 128
          %1472 = vxpose.xlu0.b32.cont [9/16] 0.0, 128
          %1473 = vxpose.xlu0.b32.cont [10/16] 0.0, 128
          %1474 = vxpose.xlu0.b32.cont [11/16] 0.0, 128
          %1475 = vxpose.xlu0.b32.cont [12/16] 0.0, 128
          %1476 = vxpose.xlu0.b32.cont [13/16] 0.0, 128
          %1477 = vxpose.xlu0.b32.cont [14/16] 0.0, 128
          %1478 = vxpose.xlu0.b32.cont [15/16] 0.0, 128
          %1479 = vxpose.xlu0.b32.end [16/16] 0.0, 128
          %v1480 = vpop.trf.xlu0
          %v1481 = vpop.trf.xlu0
          %v1482 = vpop.trf.xlu0
          %v1483 = vpop.trf.xlu0
          %v1484 = vpop.trf.xlu0
          %v1485 = vpop.trf.xlu0
          %v1486 = vpop.trf.xlu0
          %v1487 = vpop.trf.xlu0
          %v1488 = vpop.trf.xlu0
          %v1489 = vpop.trf.xlu0
          %v1490 = vpop.trf.xlu0
          %v1491 = vpop.trf.xlu0
          %v1492 = vpop.trf.xlu0
          %v1493 = vpop.trf.xlu0
          %v1494 = vpop.trf.xlu0
          %v1495 = vpop.trf.xlu0
          %vm1496 = vcmask 7168
          %v1498 = vsel %vm1496, %v1480, 0
          %v1501 = vsel %vm1496, %v1481, 0
          %v1504 = vsel %vm1496, %v1482, 0
          %v1507 = vsel %vm1496, %v1483, 0
          %v1510 = vsel %vm1496, %v1484, 0
          %v1513 = vsel %vm1496, %v1485, 0
          %v1516 = vsel %vm1496, %v1486, 0
          %v1519 = vsel %vm1496, %v1487, 0
          %v1522 = vsel %vm1496, %v1488, 0
          %v1525 = vsel %vm1496, %v1489, 0
          %v1528 = vsel %vm1496, %v1490, 0
          %v1531 = vsel %vm1496, %v1491, 0
          %v1534 = vsel %vm1496, %v1492, 0
          %v1537 = vsel %vm1496, %v1493, 0
          %v1540 = vsel %vm1496, %v1494, 0
          %v1543 = vsel %vm1496, %v1495, 0
          %v1546 = vsel %vm969, %v1401, 0
          %1548 = vmatpush.msra.mxu0 0.0
          %1549 = vmatpush.msra.mxu0 0.0
          %1550 = vmatpush.msra.mxu0 0.0
          %1551 = vmatpush.msra.mxu0 0.0
          %1552 = vmatpush.msra.mxu0 0.0
          %1553 = vmatpush.msra.mxu0 0.0
          %1554 = vmatpush.msra.mxu0 0.0
          %1555 = vmatpush.msra.mxu0 0.0
          %1556 = vmatpush.msra.mxu0 0.0
          %1557 = vmatpush.msra.mxu0 0.0
          %1558 = vmatpush.msra.mxu0 0.0
          %1559 = vmatpush.msra.mxu0 0.0
          %1560 = vmatpush.msra.mxu0 0.0
          %1561 = vmatpush.msra.mxu0 0.0
          %1562 = vmatpush.msra.mxu0 0.0
          %1563 = vmatpush.msra.mxu0 %v1546
          %1564 = vmatmul.f32.gmra.mxu0 %v1498
          %v1565 = vpop.f32.mrf.mxu0
          %v1566 = vadd.f32 0.0, %v1565
          %1567 = vmatmul.f32.gmra.mxu0 %v1501
          %v1568 = vpop.f32.mrf.mxu0
          %v1569 = vadd.f32 0.0, %v1568
          %1570 = vmatmul.f32.gmra.mxu0 %v1504
          %v1571 = vpop.f32.mrf.mxu0
          %v1572 = vadd.f32 0.0, %v1571
          %1573 = vmatmul.f32.gmra.mxu0 %v1507
          %v1574 = vpop.f32.mrf.mxu0
          %v1575 = vadd.f32 0.0, %v1574
          %1576 = vmatmul.f32.gmra.mxu0 %v1510
          %v1577 = vpop.f32.mrf.mxu0
          %v1578 = vadd.f32 0.0, %v1577
          %1579 = vmatmul.f32.gmra.mxu0 %v1513
          %v1580 = vpop.f32.mrf.mxu0
          %v1581 = vadd.f32 0.0, %v1580
          %1582 = vmatmul.f32.gmra.mxu0 %v1516
          %v1583 = vpop.f32.mrf.mxu0
          %v1584 = vadd.f32 0.0, %v1583
          %1585 = vmatmul.f32.gmra.mxu0 %v1519
          %v1586 = vpop.f32.mrf.mxu0
          %v1587 = vadd.f32 0.0, %v1586
          %1588 = vmatmul.f32.gmra.mxu0 %v1522
          %v1589 = vpop.f32.mrf.mxu0
          %v1590 = vadd.f32 0.0, %v1589
          %1591 = vmatmul.f32.gmra.mxu0 %v1525
          %v1592 = vpop.f32.mrf.mxu0
          %v1593 = vadd.f32 0.0, %v1592
          %1594 = vmatmul.f32.gmra.mxu0 %v1528
          %v1595 = vpop.f32.mrf.mxu0
          %v1596 = vadd.f32 0.0, %v1595
          %1597 = vmatmul.f32.gmra.mxu0 %v1531
          %v1598 = vpop.f32.mrf.mxu0
          %v1599 = vadd.f32 0.0, %v1598
          %1600 = vmatmul.f32.gmra.mxu0 %v1534
          %v1601 = vpop.f32.mrf.mxu0
          %v1602 = vadd.f32 0.0, %v1601
          %1603 = vmatmul.f32.gmra.mxu0 %v1537
          %v1604 = vpop.f32.mrf.mxu0
          %v1605 = vadd.f32 0.0, %v1604
          %1606 = vmatmul.f32.gmra.mxu0 %v1540
          %v1607 = vpop.f32.mrf.mxu0
          %v1608 = vadd.f32 0.0, %v1607
          %1609 = vmatmul.f32.gmra.mxu0 %v1543
          %v1610 = vpop.f32.mrf.mxu0
          %v1611 = vadd.f32 0.0, %v1610
          %1612 = vdwg.mxu0
          %v1613 = vmul.f32 %v1566, 16.0
          %v1614 = vmul.f32 %v1569, 16.0
          %v1615 = vmul.f32 %v1572, 16.0
          %v1616 = vmul.f32 %v1575, 16.0
          %v1617 = vmul.f32 %v1578, 16.0
          %v1618 = vmul.f32 %v1581, 16.0
          %v1619 = vmul.f32 %v1584, 16.0
          %v1620 = vmul.f32 %v1587, 16.0
          %v1621 = vmul.f32 %v1590, 16.0
          %v1622 = vmul.f32 %v1593, 16.0
          %v1623 = vmul.f32 %v1596, 16.0
          %v1624 = vmul.f32 %v1599, 16.0
          %v1625 = vmul.f32 %v1602, 16.0
          %v1626 = vmul.f32 %v1605, 16.0
          %v1627 = vmul.f32 %v1608, 16.0
          %v1628 = vmul.f32 %v1611, 16.0
          %v1629 = vsub.f32 %v1448, %v1613
          %v1630 = vsub.f32 %v1449, %v1614
          %v1631 = vsub.f32 %v1450, %v1615
          %v1632 = vsub.f32 %v1451, %v1616
          %v1633 = vsub.f32 %v1452, %v1617
          %v1634 = vsub.f32 %v1453, %v1618
          %v1635 = vsub.f32 %v1454, %v1619
          %v1636 = vsub.f32 %v1455, %v1620
          %v1637 = vsub.f32 %v1456, %v1621
          %v1638 = vsub.f32 %v1457, %v1622
          %v1639 = vsub.f32 %v1458, %v1623
          %v1640 = vsub.f32 %v1459, %v1624
          %v1641 = vsub.f32 %v1460, %v1625
          %v1642 = vsub.f32 %v1461, %v1626
          %v1643 = vsub.f32 %v1462, %v1627
          %v1644 = vsub.f32 %v1463, %v1628
          %v1645 = vmul.f32 %v1629, %v1412
          %v1646 = vmul.f32 %v1630, %v1412
          %v1647 = vmul.f32 %v1631, %v1412
          %v1648 = vmul.f32 %v1632, %v1412
          %v1649 = vmul.f32 %v1633, %v1412
          %v1650 = vmul.f32 %v1634, %v1412
          %v1651 = vmul.f32 %v1635, %v1412
          %v1652 = vmul.f32 %v1636, %v1412
          %v1653 = vmul.f32 %v1637, %v1412
          %v1654 = vmul.f32 %v1638, %v1412
          %v1655 = vmul.f32 %v1639, %v1412
          %v1656 = vmul.f32 %v1640, %v1412
          %v1657 = vmul.f32 %v1641, %v1412
          %v1658 = vmul.f32 %v1642, %v1412
          %v1659 = vmul.f32 %v1643, %v1412
          %v1660 = vmul.f32 %v1644, %v1412
          %v1661 = vld [vmem:[#allocation5] sm:$0xff]
          %v1662 = vld [vmem:[#allocation5 + $0x8] sm:$0xff]
          %v1663 = vld [vmem:[#allocation5 + $0x10] sm:$0xff]
          %v1664 = vld [vmem:[#allocation5 + $0x18] sm:$0xff]
          %v1665 = vld [vmem:[#allocation5 + $0x20] sm:$0xff]
          %v1666 = vld [vmem:[#allocation5 + $0x28] sm:$0xff]
          %v1667 = vld [vmem:[#allocation5 + $0x30] sm:$0xff]
          %v1668 = vld [vmem:[#allocation5 + $0x38] sm:$0xff]
          %v1669 = vld [vmem:[#allocation5 + $0x40] sm:$0xff]
          %v1670 = vld [vmem:[#allocation5 + $0x48] sm:$0xff]
          %v1671 = vld [vmem:[#allocation5 + $0x50] sm:$0xff]
          %v1672 = vld [vmem:[#allocation5 + $0x58] sm:$0xff]
          %v1673 = vld [vmem:[#allocation5 + $0x60] sm:$0xff]
          %v1674 = vld [vmem:[#allocation5 + $0x68] sm:$0xff]
          %v1675 = vld [vmem:[#allocation5 + $0x70] sm:$0xff]
          %v1676 = vld [vmem:[#allocation5 + $0x78] sm:$0xff]
          %v1677 = vrot.slane %v1401, 1
          %1679 = vxpose.xlu0.b32.start [1/16] %v1677, 128
          %1680 = vxpose.xlu0.b32.cont [2/16] 0.0, 128
          %1681 = vxpose.xlu0.b32.cont [3/16] 0.0, 128
          %1682 = vxpose.xlu0.b32.cont [4/16] 0.0, 128
          %1683 = vxpose.xlu0.b32.cont [5/16] 0.0, 128
          %1684 = vxpose.xlu0.b32.cont [6/16] 0.0, 128
          %1685 = vxpose.xlu0.b32.cont [7/16] 0.0, 128
          %1686 = vxpose.xlu0.b32.cont [8/16] 0.0, 128
          %1687 = vxpose.xlu0.b32.cont [9/16] 0.0, 128
          %1688 = vxpose.xlu0.b32.cont [10/16] 0.0, 128
          %1689 = vxpose.xlu0.b32.cont [11/16] 0.0, 128
          %1690 = vxpose.xlu0.b32.cont [12/16] 0.0, 128
          %1691 = vxpose.xlu0.b32.cont [13/16] 0.0, 128
          %1692 = vxpose.xlu0.b32.cont [14/16] 0.0, 128
          %1693 = vxpose.xlu0.b32.cont [15/16] 0.0, 128
          %1694 = vxpose.xlu0.b32.end [16/16] 0.0, 128
          %v1695 = vpop.trf.xlu0
          %v1696 = vpop.trf.xlu0
          %v1697 = vpop.trf.xlu0
          %v1698 = vpop.trf.xlu0
          %v1699 = vpop.trf.xlu0
          %v1700 = vpop.trf.xlu0
          %v1701 = vpop.trf.xlu0
          %v1702 = vpop.trf.xlu0
          %v1703 = vpop.trf.xlu0
          %v1704 = vpop.trf.xlu0
          %v1705 = vpop.trf.xlu0
          %v1706 = vpop.trf.xlu0
          %v1707 = vpop.trf.xlu0
          %v1708 = vpop.trf.xlu0
          %v1709 = vpop.trf.xlu0
          %v1710 = vpop.trf.xlu0
          %v1712 = vsel %vm1496, %v1695, 0
          %v1715 = vsel %vm1496, %v1696, 0
          %v1718 = vsel %vm1496, %v1697, 0
          %v1721 = vsel %vm1496, %v1698, 0
          %v1724 = vsel %vm1496, %v1699, 0
          %v1727 = vsel %vm1496, %v1700, 0
          %v1730 = vsel %vm1496, %v1701, 0
          %v1733 = vsel %vm1496, %v1702, 0
          %v1736 = vsel %vm1496, %v1703, 0
          %v1739 = vsel %vm1496, %v1704, 0
          %v1742 = vsel %vm1496, %v1705, 0
          %v1745 = vsel %vm1496, %v1706, 0
          %v1748 = vsel %vm1496, %v1707, 0
          %v1751 = vsel %vm1496, %v1708, 0
          %v1754 = vsel %vm1496, %v1709, 0
          %v1757 = vsel %vm1496, %v1710, 0
          %v1759 = vsel %vm969, %v1677, 0
          %1761 = vmatpush.msra.mxu0 0.0
          %1762 = vmatpush.msra.mxu0 0.0
          %1763 = vmatpush.msra.mxu0 0.0
          %1764 = vmatpush.msra.mxu0 0.0
          %1765 = vmatpush.msra.mxu0 0.0
          %1766 = vmatpush.msra.mxu0 0.0
          %1767 = vmatpush.msra.mxu0 0.0
          %1768 = vmatpush.msra.mxu0 0.0
          %1769 = vmatpush.msra.mxu0 0.0
          %1770 = vmatpush.msra.mxu0 0.0
          %1771 = vmatpush.msra.mxu0 0.0
          %1772 = vmatpush.msra.mxu0 0.0
          %1773 = vmatpush.msra.mxu0 0.0
          %1774 = vmatpush.msra.mxu0 0.0
          %1775 = vmatpush.msra.mxu0 0.0
          %1776 = vmatpush.msra.mxu0 %v1759
          %1777 = vmatmul.f32.gmra.mxu0 %v1712
          %v1778 = vpop.f32.mrf.mxu0
          %v1779 = vadd.f32 0.0, %v1778
          %1780 = vmatmul.f32.gmra.mxu0 %v1715
          %v1781 = vpop.f32.mrf.mxu0
          %v1782 = vadd.f32 0.0, %v1781
          %1783 = vmatmul.f32.gmra.mxu0 %v1718
          %v1784 = vpop.f32.mrf.mxu0
          %v1785 = vadd.f32 0.0, %v1784
          %1786 = vmatmul.f32.gmra.mxu0 %v1721
          %v1787 = vpop.f32.mrf.mxu0
          %v1788 = vadd.f32 0.0, %v1787
          %1789 = vmatmul.f32.gmra.mxu0 %v1724
          %v1790 = vpop.f32.mrf.mxu0
          %v1791 = vadd.f32 0.0, %v1790
          %1792 = vmatmul.f32.gmra.mxu0 %v1727
          %v1793 = vpop.f32.mrf.mxu0
          %v1794 = vadd.f32 0.0, %v1793
          %1795 = vmatmul.f32.gmra.mxu0 %v1730
          %v1796 = vpop.f32.mrf.mxu0
          %v1797 = vadd.f32 0.0, %v1796
          %1798 = vmatmul.f32.gmra.mxu0 %v1733
          %v1799 = vpop.f32.mrf.mxu0
          %v1800 = vadd.f32 0.0, %v1799
          %1801 = vmatmul.f32.gmra.mxu0 %v1736
          %v1802 = vpop.f32.mrf.mxu0
          %v1803 = vadd.f32 0.0, %v1802
          %1804 = vmatmul.f32.gmra.mxu0 %v1739
          %v1805 = vpop.f32.mrf.mxu0
          %v1806 = vadd.f32 0.0, %v1805
          %1807 = vmatmul.f32.gmra.mxu0 %v1742
          %v1808 = vpop.f32.mrf.mxu0
          %v1809 = vadd.f32 0.0, %v1808
          %1810 = vmatmul.f32.gmra.mxu0 %v1745
          %v1811 = vpop.f32.mrf.mxu0
          %v1812 = vadd.f32 0.0, %v1811
          %1813 = vmatmul.f32.gmra.mxu0 %v1748
          %v1814 = vpop.f32.mrf.mxu0
          %v1815 = vadd.f32 0.0, %v1814
          %1816 = vmatmul.f32.gmra.mxu0 %v1751
          %v1817 = vpop.f32.mrf.mxu0
          %v1818 = vadd.f32 0.0, %v1817
          %1819 = vmatmul.f32.gmra.mxu0 %v1754
          %v1820 = vpop.f32.mrf.mxu0
          %v1821 = vadd.f32 0.0, %v1820
          %1822 = vmatmul.f32.gmra.mxu0 %v1757
          %v1823 = vpop.f32.mrf.mxu0
          %v1824 = vadd.f32 0.0, %v1823
          %1825 = vdwg.mxu0
          %v1826 = vmul.f32 %v1779, 16.0
          %v1827 = vmul.f32 %v1782, 16.0
          %v1828 = vmul.f32 %v1785, 16.0
          %v1829 = vmul.f32 %v1788, 16.0
          %v1830 = vmul.f32 %v1791, 16.0
          %v1831 = vmul.f32 %v1794, 16.0
          %v1832 = vmul.f32 %v1797, 16.0
          %v1833 = vmul.f32 %v1800, 16.0
          %v1834 = vmul.f32 %v1803, 16.0
          %v1835 = vmul.f32 %v1806, 16.0
          %v1836 = vmul.f32 %v1809, 16.0
          %v1837 = vmul.f32 %v1812, 16.0
          %v1838 = vmul.f32 %v1815, 16.0
          %v1839 = vmul.f32 %v1818, 16.0
          %v1840 = vmul.f32 %v1821, 16.0
          %v1841 = vmul.f32 %v1824, 16.0
          %v1842 = vsub.f32 %v1661, %v1826
          %v1843 = vsub.f32 %v1662, %v1827
          %v1844 = vsub.f32 %v1663, %v1828
          %v1845 = vsub.f32 %v1664, %v1829
          %v1846 = vsub.f32 %v1665, %v1830
          %v1847 = vsub.f32 %v1666, %v1831
          %v1848 = vsub.f32 %v1667, %v1832
          %v1849 = vsub.f32 %v1668, %v1833
          %v1850 = vsub.f32 %v1669, %v1834
          %v1851 = vsub.f32 %v1670, %v1835
          %v1852 = vsub.f32 %v1671, %v1836
          %v1853 = vsub.f32 %v1672, %v1837
          %v1854 = vsub.f32 %v1673, %v1838
          %v1855 = vsub.f32 %v1674, %v1839
          %v1856 = vsub.f32 %v1675, %v1840
          %v1857 = vsub.f32 %v1676, %v1841
          %v1858 = vmul.f32 %v1842, %v1412
          %v1859 = vmul.f32 %v1843, %v1412
          %v1860 = vmul.f32 %v1844, %v1412
          %v1861 = vmul.f32 %v1845, %v1412
          %v1862 = vmul.f32 %v1846, %v1412
          %v1863 = vmul.f32 %v1847, %v1412
          %v1864 = vmul.f32 %v1848, %v1412
          %v1865 = vmul.f32 %v1849, %v1412
          %v1866 = vmul.f32 %v1850, %v1412
          %v1867 = vmul.f32 %v1851, %v1412
          %v1868 = vmul.f32 %v1852, %v1412
          %v1869 = vmul.f32 %v1853, %v1412
          %v1870 = vmul.f32 %v1854, %v1412
          %v1871 = vmul.f32 %v1855, %v1412
          %v1872 = vmul.f32 %v1856, %v1412
          %v1873 = vmul.f32 %v1857, %v1412
          %v1874 = vmul.f32 %v1645, %v1645
          %v1875 = vmul.f32 %v1646, %v1646
          %v1876 = vmul.f32 %v1647, %v1647
          %v1877 = vmul.f32 %v1648, %v1648
          %v1878 = vmul.f32 %v1649, %v1649
          %v1879 = vmul.f32 %v1650, %v1650
          %v1880 = vmul.f32 %v1651, %v1651
          %v1881 = vmul.f32 %v1652, %v1652
          %v1882 = vmul.f32 %v1653, %v1653
          %v1883 = vmul.f32 %v1654, %v1654
          %v1884 = vmul.f32 %v1655, %v1655
          %v1885 = vmul.f32 %v1656, %v1656
          %v1886 = vmul.f32 %v1657, %v1657
          %v1887 = vmul.f32 %v1658, %v1658
          %v1888 = vmul.f32 %v1659, %v1659
          %v1889 = vmul.f32 %v1660, %v1660
          %v1890 = vadd.f32 %v1874, %v1875
          %v1891 = vadd.f32 %v1890, %v1876
          %v1892 = vadd.f32 %v1891, %v1877
          %v1893 = vadd.f32 %v1892, %v1878
          %v1894 = vadd.f32 %v1893, %v1879
          %v1895 = vadd.f32 %v1894, %v1880
          %v1896 = vadd.f32 %v1895, %v1881
          %v1897 = vadd.f32 %v1896, %v1882
          %v1898 = vadd.f32 %v1897, %v1883
          %v1899 = vadd.f32 %v1898, %v1884
          %v1900 = vadd.f32 %v1899, %v1885
          %v1901 = vadd.f32 %v1900, %v1886
          %v1902 = vadd.f32 %v1901, %v1887
          %v1903 = vadd.f32 %v1902, %v1888
          %v1904 = vadd.f32 %v1903, %v1889
          %1905 = vadd.xlane.f32.xlu0 %v1904
          %v1906 = vpop.xlane.xlu0 %1905
          %v1907 = vrot.slane %v1906, 4
          %v1908 = vadd.f32 %v1906, %v1907
          %v1909 = vrot.slane %v1908, 2
          %v1910 = vadd.f32 %v1908, %v1909
          %v1911 = vrot.slane %v1910, 1
          %v1912 = vadd.f32 %v1910, %v1911
          %s1913 = vtos %v1912
          %v1914 = vstv %s1913
          %v1915 = vmul.f32 %v1858, %v1858
          %v1916 = vmul.f32 %v1859, %v1859
          %v1917 = vmul.f32 %v1860, %v1860
          %v1918 = vmul.f32 %v1861, %v1861
          %v1919 = vmul.f32 %v1862, %v1862
          %v1920 = vmul.f32 %v1863, %v1863
          %v1921 = vmul.f32 %v1864, %v1864
          %v1922 = vmul.f32 %v1865, %v1865
          %v1923 = vmul.f32 %v1866, %v1866
          %v1924 = vmul.f32 %v1867, %v1867
          %v1925 = vmul.f32 %v1868, %v1868
          %v1926 = vmul.f32 %v1869, %v1869
          %v1927 = vmul.f32 %v1870, %v1870
          %v1928 = vmul.f32 %v1871, %v1871
          %v1929 = vmul.f32 %v1872, %v1872
          %v1930 = vmul.f32 %v1873, %v1873
          %v1931 = vadd.f32 %v1915, %v1916
          %v1932 = vadd.f32 %v1931, %v1917
          %v1933 = vadd.f32 %v1932, %v1918
          %v1934 = vadd.f32 %v1933, %v1919
          %v1935 = vadd.f32 %v1934, %v1920
          %v1936 = vadd.f32 %v1935, %v1921
          %v1937 = vadd.f32 %v1936, %v1922
          %v1938 = vadd.f32 %v1937, %v1923
          %v1939 = vadd.f32 %v1938, %v1924
          %v1940 = vadd.f32 %v1939, %v1925
          %v1941 = vadd.f32 %v1940, %v1926
          %v1942 = vadd.f32 %v1941, %v1927
          %v1943 = vadd.f32 %v1942, %v1928
          %v1944 = vadd.f32 %v1943, %v1929
          %v1945 = vadd.f32 %v1944, %v1930
          %1946 = vadd.xlane.f32.xlu0 %v1945
          %v1947 = vpop.xlane.xlu0 %1946
          %v1948 = vrot.slane %v1947, 4
          %v1949 = vadd.f32 %v1947, %v1948
          %v1950 = vrot.slane %v1949, 2
          %v1951 = vadd.f32 %v1949, %v1950
          %v1952 = vrot.slane %v1951, 1
          %v1953 = vadd.f32 %v1951, %v1952
          %s1954 = vtos %v1953
          %v1955 = vstv %s1954
          %v1956 = vadd.f32 %v1914, %v1955
          %v1957 = vmul.f32 %v1413, %v1413
          %v1958 = vsel %vm695, %v1957, 0.0
          %1959 = vadd.xlane.f32.xlu0 %v1958
          %v1960 = vpop.xlane.xlu0 %1959
          %v1961 = vrot.slane %v1960, 4
          %v1962 = vadd.f32 %v1960, %v1961
          %v1963 = vrot.slane %v1962, 2
          %v1964 = vadd.f32 %v1962, %v1963
          %v1965 = vrot.slane %v1964, 1
          %v1966 = vadd.f32 %v1964, %v1965
          %s1967 = vtos %v1966
          %v1968 = vstv %s1967
          %v1969 = vsub.f32 %v1956, %v1968
          %v1970 = vmul.f32 %v1969, %v1446
          %v1971 = vld [vmem:[#allocation6] sm:$0x1]
          %v1972 = vsel %vm969, %v1971, 0.0
          %1973 = vadd.xlane.f32.xlu0 %v1972
          %v1974 = vpop.xlane.xlu0 %1973
          %v1975 = vrot.slane %v1974, 4
          %v1976 = vadd.f32 %v1974, %v1975
          %v1977 = vrot.slane %v1976, 2
          %v1978 = vadd.f32 %v1976, %v1977
          %v1979 = vrot.slane %v1978, 1
          %v1980 = vadd.f32 %v1978, %v1979
          %s1981 = vtos %v1980
          %v1982 = vstv %s1981
          %v1983 = vrcp.pop 2048.0
          %v1984 = vmul.f32 2048.0, %v1983
          %v1985 = vsub.f32 1.0, %v1984
          %v1986 = vmul.f32 %v1983, %v1985
          %v1987 = vadd.f32 %v1983, %v1986
          %vm1988 = vweird.f32 %v1983
          %v1989 = vsel %vm1988, %v1983, %v1987
          %v1990 = vmul.f32 %v1982, %v1989
          %v1991 = vmul.f32 %v1990, 25.0
          %v1992 = vmul.f32 %v1447, 25.0
          %v1993 = vadd.f32 %v1991, %v1992
          %v1994 = vadd.f32 %v1993, %v1970
          %vm1995 = vcmask 0
          %1996 = vst.msk [vmem:[#allocation18] sm:$0x1] %vm1995, %v1994
        $region76: #{tpu_custom_call.1} parent=43 // pred_fallthru
          _
        // Predicated region
        $region77: #{tpu_custom_call.1} parent=43 // pred_check
          %p1997 = pneg %p175
        $region78: #{tpu_custom_call.1} parent=43 // pred_check_branch
          %1999 = sbr.rel (%p1997) target = $region80
        $region79: #{tpu_custom_call.1} parent=43 // pred_region
          %2001 = vsyncadd [#allocation9], 0
          %s2003 = sshll.u32 [#allocation18], 4
          %s2004 = int_to_ptr.vmem [resolvable:$true] %s2003
          %s2005 = sshll.u32 %s6, 4
          %s2006 = int_to_ptr.hbm [resolvable:$true] %s2005
          %2008 = dma.vmem_to_hbm [thread:$0]  %s2004, 16, %s2006, [#allocation9]
        $region80: #{tpu_custom_call.1} parent=43 // pred_fallthru
          _
        // Predicated region
        $region81: #{tpu_custom_call.1} parent=43 // pred_check
          %p2009 = pneg %p175
        $region82: #{tpu_custom_call.1} parent=43 // pred_check_branch
          %2011 = sbr.rel (%p2009) target = $region84
        $region83: #{tpu_custom_call.1} parent=43 // pred_region
          %2013 = dma.done [#allocation9], 16
        $region84: #{tpu_custom_call.1} parent=43 // pred_fallthru
          _
      $region44: #{tpu_custom_call.1} parent=5 // pred_fallthru
        _
      %p2014 = scmp.le.s32.totalorder 2, %s21
      // Predicated region
      $region85: #{tpu_custom_call.1} parent=5 // pred_check
        %p2015 = pneg %p2014
      $region86: #{tpu_custom_call.1} parent=5 // pred_check_branch
        %2017 = sbr.rel (%p2015) target = $region88
      $region87: #{tpu_custom_call.1} parent=5 // pred_region
        %s2018 = ssub.s32 %s21, 2
      $region88: #{tpu_custom_call.1} parent=5 // pred_fallthru
        _
    $region6: #{tpu_custom_call.1} parent=1 // loop_footer
      %s25 = sadd.s32 1, %s21
    $region7: #{tpu_custom_call.1} parent=1 // loop_footer_branch
      %20 = sbr.rel target = $region3
    $region8: #{tpu_custom_call.1} parent=1 // loop_exit
      _
    %2019 = vsyncpa [#allocation8], 1
    %s2020 = scalar_lea.sflag [#allocation8], 1
    %2021 = vsyncpa %s2020, 1
    %2022 = vsyncpa [#allocation11], 1
    %s2023 = scalar_lea.sflag [#allocation11], 1
    %2024 = vsyncpa %s2023, 1
    %2025 = vsyncpa [#allocation14], 1
    %2026 = vsyncpa [#allocation17], 1
    %2027 = vsyncpa [#allocation9], 1
    %s2028 = scalar_lea.sflag [#allocation9], 1
    %2029 = vsyncpa %s2028, 1

</llo_original>
